<compile_context>
chip_gen: v7x
topology: tpu7x:2x2x1
jax: 0.10.0
libtpu: 0.0.40
codegen_flags: <defaults>
</compile_context>

<pallas_src>
import jax
import jax.numpy as jnp
import numpy as np
from jax.experimental import pallas as pl
from jax.experimental.pallas import tpu as pltpu

HIDDEN = 768   # BERT hidden size (fixed by the module: Linear(768, ...))
ATTN_D = 512   # attention head inner dim (fixed by the module: Linear(768, 512))


def sen_head_kernel(h_ref, w1_ref, b1_ref, w2_ref, b2_ref, w3_ref, b3_ref,
                    out_ref):
    """One grid step processes a tile of Bt batch elements.

    h_ref  : (Bt, S, 768) bf16   last hidden states for this batch tile
    w1_ref : (768, 512)   bf16   attention[0] weight (pre-transposed)
    b1_ref : (1, 512)     f32    attention[0] bias
    w2_ref : (1, 512)     f32    attention[2] weight, stored as a row
    b2_ref : (1, 1)       f32    attention[2] bias (SMEM scalar)
    w3_ref : (1, 768)     f32    final Linear weight, stored as a row
    b3_ref : (1, 1)       f32    final Linear bias (SMEM scalar)
    out_ref: (1, Bt, 1)   f32    per-step output block
    """
    Bt, S, H = h_ref.shape
    h = h_ref[...]                                   # (Bt, S, 768) bf16
    h2 = h.reshape(Bt * S, H)                        # flatten: big MXU M dim

    # attention MLP hidden: tanh(h @ W1 + b1)  -- bf16 MXU, f32 accumulate.
    a = jnp.tanh(
        jnp.dot(h2, w1_ref[...], preferred_element_type=jnp.float32)
        + b1_ref[...])                               # (Bt*S, 512) f32
    a = a.reshape(Bt, S, ATTN_D)                     # (Bt, S, 512)

    # scores = a @ w2 + b2 as VPU multiply + cross-lane reduce
    # (keeps the N=1 matmul off the MXU).
    scores = jnp.sum(a * w2_ref[...], axis=-1) + b2_ref[0, 0]     # (Bt, S)

    # hv = h @ w3 per (batch, seq) position; replaces the ctx materialization:
    #   sum_s(wts_s * h_s) @ w3  ==  sum_s wts_s * (h_s @ w3)
    hv = jnp.sum(h.astype(jnp.float32) * w3_ref[...], axis=-1)    # (Bt, S)

    # softmax over the sequence axis (torch Softmax(dim=1)), f32, stable.
    m = jnp.max(scores, axis=-1, keepdims=True)
    e = jnp.exp(scores - m)
    wts = e * pl.reciprocal(jnp.sum(e, axis=-1, keepdims=True), approx=True)

    # final scalar per batch row.
    y = jnp.sum(wts * hv, axis=-1, keepdims=True) + b3_ref[0, 0]  # (Bt, 1)
    out_ref[0] = y.astype(out_ref.dtype)


def _pick_batch_tile(B, S, bytes_per_elem=2, budget_bytes=2 * 1024 * 1024):
    """Largest divisor of B whose bf16 hidden-state tile fits the budget."""
    per_batch = S * HIDDEN * bytes_per_elem
    best = 1
    for bt in range(1, B + 1):
        if B % bt == 0 and bt * per_batch <= budget_bytes:
            best = bt
    return best


def sen_head(h, w1, b1, w2, b2, w3, b3, *, batch_tile=None):
    """h: (B, S, 768) float32 -> (B, 1) float32."""
    B, S, H = h.shape
    assert H == HIDDEN

    Bt = _pick_batch_tile(B, S) if batch_tile is None else batch_tile
    assert B % Bt == 0
    n_steps = B // Bt

    # Mixed precision at the boundary: bf16 inputs for the big matmul
    # (halves HBM traffic for h), f32 everywhere else.
    h_bf = h.astype(jnp.bfloat16)
    w1_bf = w1.astype(jnp.bfloat16)
    b1_row = b1.reshape(1, ATTN_D).astype(jnp.float32)
    w2_row = w2.reshape(1, ATTN_D).astype(jnp.float32)   # (512,1) -> row
    w3_row = w3.reshape(1, HIDDEN).astype(jnp.float32)   # (768,1) -> row
    b2_s = b2.reshape(1, 1).astype(jnp.float32)
    b3_s = b3.reshape(1, 1).astype(jnp.float32)

    grid_spec = pltpu.PrefetchScalarGridSpec(
        num_scalar_prefetch=0,
        grid=(n_steps,),
        in_specs=[
            pl.BlockSpec((Bt, S, H), lambda i: (i, 0, 0)),        # hidden states
            pl.BlockSpec((H, ATTN_D), lambda i: (0, 0)),          # W1 (bf16)
            pl.BlockSpec((1, ATTN_D), lambda i: (0, 0)),          # b1
            pl.BlockSpec((1, ATTN_D), lambda i: (0, 0)),          # W2 row
            pl.BlockSpec(memory_space=pltpu.MemorySpace.SMEM),    # b2 scalar
            pl.BlockSpec((1, HIDDEN), lambda i: (0, 0)),          # W3 row
            pl.BlockSpec(memory_space=pltpu.MemorySpace.SMEM),    # b3 scalar
        ],
        # Per-step output block (whole slab written once per step); 3-D shape
        # keeps the last two block dims equal to the full array dims for any Bt.
        out_specs=pl.BlockSpec((1, Bt, 1), lambda i: (i, 0, 0)),
    )

    out3 = pl.pallas_call(
        sen_head_kernel,
        out_shape=jax.ShapeDtypeStruct((n_steps, Bt, 1), jnp.float32),
        grid_spec=grid_spec,
        compiler_params=pltpu.CompilerParams(
            dimension_semantics=("parallel",),       # batch tiles independent
            vmem_limit_bytes=32 * 1024 * 1024),
    )(h_bf, w1_bf, b1_row, w2_row, b2_s, w3_row, b3_s)

    return out3.reshape(B, 1)


def sen_head_ref(h, w1, b1, w2, b2, w3, b3):
    """Pure-JAX reference mirroring the PyTorch forward (post-BERT).

    Uses the same bf16 rounding of h / W1 as the kernel so the comparison
    isolates kernel correctness rather than mixed-precision policy.
    """
    hb = h.astype(jnp.bfloat16).astype(jnp.float32)
    w1b = w1.astype(jnp.bfloat16).astype(jnp.float32)
    a = jnp.tanh(jnp.einsum("bsh,hd->bsd", hb, w1b) + b1)         # (B, S, 512)
    scores = jnp.einsum("bsd,do->bso", a, w2) + b2[0, 0]          # (B, S, 1)
    wts = jax.nn.softmax(scores, axis=1)
    ctx = jnp.sum(wts * hb, axis=1)                               # (B, 768)
    return ctx @ w3 + b3[0, 0]                                    # (B, 1)


if __name__ == "__main__":
    key = jax.random.PRNGKey(0)
    k_h, k_w1, k_b1, k_w2, k_b2, k_w3, k_b3 = jax.random.split(key, 7)

    B, S = 2, 8  # small batch / sequence length

    # Stand-in for outputs.hidden_states[-1] of the BERT backbone.
    h = jax.random.normal(k_h, (B, S, HIDDEN), dtype=jnp.float32)

    # Deterministic synthetic parameters (shapes from the module __init__).
    w1 = 0.02 * jax.random.normal(k_w1, (HIDDEN, ATTN_D), dtype=jnp.float32)
    b1 = 0.02 * jax.random.normal(k_b1, (1, ATTN_D), dtype=jnp.float32)
    w2 = 0.02 * jax.random.normal(k_w2, (ATTN_D, 1), dtype=jnp.float32)
    b2 = 0.02 * jax.random.normal(k_b2, (1, 1), dtype=jnp.float32)
    w3 = 0.02 * jax.random.normal(k_w3, (HIDDEN, 1), dtype=jnp.float32)
    b3 = 0.02 * jax.random.normal(k_b3, (1, 1), dtype=jnp.float32)

    out = sen_head(h, w1, b1, w2, b2, w3, b3)
    out = jax.block_until_ready(out)

    ref = sen_head_ref(h, w1, b1, w2, b2, w3, b3)
    np.testing.assert_allclose(np.asarray(out), np.asarray(ref),
                               rtol=2e-3, atol=2e-3)

    print("KERNEL_OK")
</pallas_src>

<mosaic_0001>
module attributes {stable_mosaic.version = 11 : i64} {
  func.func @sen_head_kernel(%arg0: i32, %arg1: memref<2x8x768xbf16, #tpu.memory_space<vmem>>, %arg2: memref<768x512xbf16, #tpu.memory_space<vmem>>, %arg3: memref<1x512xf32, #tpu.memory_space<vmem>>, %arg4: memref<1x512xf32, #tpu.memory_space<vmem>>, %arg5: memref<1x1xf32, #tpu.memory_space<smem>>, %arg6: memref<1x768xf32, #tpu.memory_space<vmem>>, %arg7: memref<1x1xf32, #tpu.memory_space<smem>>, %arg8: memref<1x2x1xf32, #tpu.memory_space<vmem>>) attributes {dimension_semantics = [#tpu.dimension_semantics<parallel>], iteration_bounds = array<i64: 1>, scalar_prefetch = 0 : i64, scratch_operands = 0 : i64, tpu.core_type = #tpu.core_type<tc>, window_params = [{transform_indices = @transform_0, window_bounds = array<i64: 2, 8, 768>}, {pipeline_mode = #tpu.pipeline_mode<synchronous>, transform_indices = @transform_1, window_bounds = array<i64: 768, 512>}, {pipeline_mode = #tpu.pipeline_mode<synchronous>, transform_indices = @transform_2, window_bounds = array<i64: 1, 512>}, {pipeline_mode = #tpu.pipeline_mode<synchronous>, transform_indices = @transform_3, window_bounds = array<i64: 1, 512>}, {transform_indices = @transform_4, window_bounds = array<i64: 1, 1>}, {pipeline_mode = #tpu.pipeline_mode<synchronous>, transform_indices = @transform_5, window_bounds = array<i64: 1, 768>}, {transform_indices = @transform_6, window_bounds = array<i64: 1, 1>}, {transform_indices = @transform_7, window_bounds = array<i64: 1, 2, 1>}]} {
    %c0 = arith.constant 0 : index
    %c0_0 = arith.constant 0 : index
    %c0_1 = arith.constant 0 : index
    %0 = vector.load %arg1[%c0, %c0_0, %c0_1] : memref<2x8x768xbf16, #tpu.memory_space<vmem>>, vector<2x8x768xbf16>
    %1 = vector.shape_cast %0 : vector<2x8x768xbf16> to vector<16x768xbf16>
    %c0_2 = arith.constant 0 : index
    %c0_3 = arith.constant 0 : index
    %2 = vector.load %arg2[%c0_2, %c0_3] : memref<768x512xbf16, #tpu.memory_space<vmem>>, vector<768x512xbf16>
    %cst = arith.constant dense<0.000000e+00> : vector<16x512xf32>
    %3 = tpu.matmul %1, %2, %cst {dimension_numbers = #tpu.dot_dimension_numbers<[1], [0], [0], [1], [0, 0, 1, 1], [], []>} : vector<16x768xbf16>, vector<768x512xbf16>, vector<16x512xf32> -> vector<16x512xf32>
    %c0_4 = arith.constant 0 : index
    %c0_5 = arith.constant 0 : index
    %4 = vector.load %arg3[%c0_4, %c0_5] : memref<1x512xf32, #tpu.memory_space<vmem>>, vector<1x512xf32>
    %5 = vector.broadcast %4 : vector<1x512xf32> to vector<16x512xf32>
    %6 = arith.addf %3, %5 : vector<16x512xf32>
    %7 = math.tanh %6 : vector<16x512xf32>
    %8 = vector.shape_cast %7 : vector<16x512xf32> to vector<2x8x512xf32>
    %c0_6 = arith.constant 0 : index
    %c0_7 = arith.constant 0 : index
    %9 = vector.load %arg4[%c0_6, %c0_7] : memref<1x512xf32, #tpu.memory_space<vmem>>, vector<1x512xf32>
    %10 = vector.shape_cast %9 : vector<1x512xf32> to vector<1x1x512xf32>
    %11 = vector.broadcast %10 : vector<1x1x512xf32> to vector<2x8x512xf32>
    %12 = arith.mulf %8, %11 : vector<2x8x512xf32>
    %cst_8 = arith.constant dense<0.000000e+00> : vector<2x8xf32>
    %13 = vector.multi_reduction <add>, %12, %cst_8 [2] : vector<2x8x512xf32> to vector<2x8xf32>
    %c0_9 = arith.constant 0 : index
    %c0_10 = arith.constant 0 : index
    %14 = memref.load %arg5[%c0_9, %c0_10] : memref<1x1xf32, #tpu.memory_space<smem>>
    %15 = vector.broadcast %14 : f32 to vector<2x8xf32>
    %16 = arith.addf %13, %15 : vector<2x8xf32>
    %17 = arith.extf %0 : vector<2x8x768xbf16> to vector<2x8x768xf32>
    %c0_11 = arith.constant 0 : index
    %c0_12 = arith.constant 0 : index
    %18 = vector.load %arg6[%c0_11, %c0_12] : memref<1x768xf32, #tpu.memory_space<vmem>>, vector<1x768xf32>
    %19 = vector.shape_cast %18 : vector<1x768xf32> to vector<1x1x768xf32>
    %20 = vector.broadcast %19 : vector<1x1x768xf32> to vector<2x8x768xf32>
    %21 = arith.mulf %17, %20 : vector<2x8x768xf32>
    %cst_13 = arith.constant dense<0.000000e+00> : vector<2x8xf32>
    %22 = vector.multi_reduction <add>, %21, %cst_13 [2] : vector<2x8x768xf32> to vector<2x8xf32>
    %cst_14 = arith.constant dense<0xFF800000> : vector<2xf32>
    %23 = vector.multi_reduction <maximumf>, %16, %cst_14 [1] : vector<2x8xf32> to vector<2xf32>
    %24 = vector.shape_cast %23 : vector<2xf32> to vector<2x1xf32>
    %25 = vector.broadcast %24 : vector<2x1xf32> to vector<2x8xf32>
    %26 = arith.subf %16, %25 : vector<2x8xf32>
    %27 = math.exp %26 : vector<2x8xf32>
    %cst_15 = arith.constant dense<0.000000e+00> : vector<2xf32>
    %28 = vector.multi_reduction <add>, %27, %cst_15 [1] : vector<2x8xf32> to vector<2xf32>
    %29 = vector.shape_cast %28 : vector<2xf32> to vector<2x1xf32>
    %30 = tpu.reciprocal %29 {approx = true} : vector<2x1xf32> -> vector<2x1xf32>
    %31 = vector.broadcast %30 : vector<2x1xf32> to vector<2x8xf32>
    %32 = arith.mulf %27, %31 : vector<2x8xf32>
    %33 = arith.mulf %32, %22 : vector<2x8xf32>
    %cst_16 = arith.constant dense<0.000000e+00> : vector<2xf32>
    %34 = vector.multi_reduction <add>, %33, %cst_16 [1] : vector<2x8xf32> to vector<2xf32>
    %35 = vector.shape_cast %34 : vector<2xf32> to vector<2x1xf32>
    %c0_17 = arith.constant 0 : index
    %c0_18 = arith.constant 0 : index
    %36 = memref.load %arg7[%c0_17, %c0_18] : memref<1x1xf32, #tpu.memory_space<smem>>
    %37 = vector.broadcast %36 : f32 to vector<2x1xf32>
    %38 = arith.addf %35, %37 : vector<2x1xf32>
    %c0_19 = arith.constant 0 : index
    %c0_20 = arith.constant 0 : index
    %c0_21 = arith.constant 0 : index
    %39 = vector.load %arg8[%c0_19, %c0_20, %c0_21] : memref<1x2x1xf32, #tpu.memory_space<vmem>>, vector<1x2x1xf32>
    %40 = vector.shape_cast %39 : vector<1x2x1xf32> to vector<2x1xf32>
    %41 = vector.shape_cast %38 : vector<2x1xf32> to vector<1x2x1xf32>
    tpu.vector_store %arg8[%c0_19, %c0_20, %c0_21], %41 {strides = array<i32>} : memref<1x2x1xf32, #tpu.memory_space<vmem>>, vector<1x2x1xf32>,
    return
  }
  func.func @transform_0(%arg0: i32) -> (i32, i32, i32) {
    %c0_i32 = arith.constant 0 : i32
    %c0_i32_0 = arith.constant 0 : i32
    %c0_i32_1 = arith.constant 0 : i32
    return %arg0, %c0_i32, %c0_i32_0 : i32, i32, i32
  }
  func.func @transform_1(%arg0: i32) -> (i32, i32) {
    %c0_i32 = arith.constant 0 : i32
    %c0_i32_0 = arith.constant 0 : i32
    %c0_i32_1 = arith.constant 0 : i32
    return %c0_i32, %c0_i32_0 : i32, i32
  }
  func.func @transform_2(%arg0: i32) -> (i32, i32) {
    %c0_i32 = arith.constant 0 : i32
    %c0_i32_0 = arith.constant 0 : i32
    %c0_i32_1 = arith.constant 0 : i32
    return %c0_i32, %c0_i32_0 : i32, i32
  }
  func.func @transform_3(%arg0: i32) -> (i32, i32) {
    %c0_i32 = arith.constant 0 : i32
    %c0_i32_0 = arith.constant 0 : i32
    %c0_i32_1 = arith.constant 0 : i32
    return %c0_i32, %c0_i32_0 : i32, i32
  }
  func.func @transform_4(%arg0: i32) -> (i32, i32) {
    %c0_i32 = arith.constant 0 : i32
    %c0_i32_0 = arith.constant 0 : i32
    %c0_i32_1 = arith.constant 0 : i32
    return %c0_i32, %c0_i32_0 : i32, i32
  }
  func.func @transform_5(%arg0: i32) -> (i32, i32) {
    %c0_i32 = arith.constant 0 : i32
    %c0_i32_0 = arith.constant 0 : i32
    %c0_i32_1 = arith.constant 0 : i32
    return %c0_i32, %c0_i32_0 : i32, i32
  }
  func.func @transform_6(%arg0: i32) -> (i32, i32) {
    %c0_i32 = arith.constant 0 : i32
    %c0_i32_0 = arith.constant 0 : i32
    %c0_i32_1 = arith.constant 0 : i32
    return %c0_i32, %c0_i32_0 : i32, i32
  }
  func.func @transform_7(%arg0: i32) -> (i32, i32, i32) {
    %c0_i32 = arith.constant 0 : i32
    %c0_i32_0 = arith.constant 0 : i32
    %c0_i32_1 = arith.constant 0 : i32
    return %arg0, %c0_i32, %c0_i32_0 : i32, i32, i32
  }
}

</mosaic_0001>

<llo_original>
// kernel: tpu_custom_call.1
$region0: #{tpu_custom_call.1}
  #allocation0 [shape = 'u32[]', space=smem, size = 0x4, offset = 0x4, fixed_abs, tag = 'smem constant byte address 0x4 - core index']
  #allocation1 [shape = 'u32[144,128]{1,0:T(1,128)}', space=vmem, size = 0x12000, scoped, tag = 'internal scratch']
  #allocation2 [shape = 'f32[1,1]{1,0:T(1,128)S(6)}', space=smem, size = 0x200, scoped, tag = 'scoped memory for tpu_custom_call.1']
  #allocation3 [shape = 'f32[1,1]{1,0:T(1,128)S(6)}', space=smem, size = 0x200, scoped, tag = 'scoped memory for tpu_custom_call.1']
  %s0 = inlined_call_operand.hbm [shape: bf16[2,8,768], index: 0, kind: input, shape index: {}]
  %s1 = inlined_call_operand.hbm [shape: bf16[768,512], index: 1, kind: input, shape index: {}]
  %s2 = inlined_call_operand.vmem [shape: f32[1,512], index: 2, kind: input, shape index: {}]
  %s3 = inlined_call_operand.vmem [shape: f32[1,512], index: 3, kind: input, shape index: {}]
  %s4 = inlined_call_operand.<no memory space> [shape: f32[1,1], index: 4, kind: input, shape index: {}]
  %s5 = inlined_call_operand.vmem [shape: f32[1,768], index: 5, kind: input, shape index: {}]
  %s6 = inlined_call_operand.<no memory space> [shape: f32[1,1], index: 6, kind: input, shape index: {}]
  %s7 = inlined_call_operand.vmem [shape: f32[1,2,1], index: 7, kind: output, shape index: {}]
  %s8 = sld [smem:[#allocation0]]
  $region46: #{tpu_custom_call.1} parent=0
    _
  %s10 = ssub.s32 1, %s8
  %s11 = scalar_select 0, %s10, %s8
  %12 = sst [smem:[#allocation2]] %s4
  %13 = sst [smem:[#allocation3]] %s6
  $region1: #{tpu_custom_call.1} parent=0
    #allocation4 [shape = 'u8[24576]{0}', space=vmem, size = 0x6000, scoped, tag = 'input window, operand 0, single buffered']
    #allocation5 [shape = 's32[1]{0}', space=sflag, size = 0x4, scoped, tag = 'scoped memory for tpu_custom_call.1']
    #allocation6 [shape = 'u8[786432]{0}', space=vmem, size = 0xc0000, scoped, tag = 'input window, operand 1, single buffered']
    #allocation7 [shape = 's32[1]{0}', space=sflag, size = 0x4, scoped, tag = 'scoped memory for tpu_custom_call.1']
    %14 = vsyncpa [#allocation5], 0
    %15 = vsyncpa [#allocation7], 0
    // Predicated region
    $region2: #{tpu_custom_call.1} parent=1 // pred_check
      _
    $region3: #{tpu_custom_call.1} parent=1 // pred_check_branch
      %17 = sbr.rel (0) target = $region5
    $region4: #{tpu_custom_call.1} parent=1 // pred_region
      %s19 = ssub.s32 768, 768
      %20 = vsyncadd [#allocation5], %s19
      %s21 = sshll.u32 [#allocation4], 4
      %s22 = int_to_ptr.vmem [resolvable:$true] %s21
      %27 = dma.hbm_to_vmem [thread:$0]  %s0, 768, %s22, [#allocation5], 384, 384, 24
    $region5: #{tpu_custom_call.1} parent=1 // pred_fallthru
      _
    // Predicated region
    $region6: #{tpu_custom_call.1} parent=1 // pred_check
      _
    $region7: #{tpu_custom_call.1} parent=1 // pred_check_branch
      %29 = sbr.rel (0) target = $region9
    $region8: #{tpu_custom_call.1} parent=1 // pred_region
      %s31 = ssub.s32 24576, 24576
      %32 = vsyncadd [#allocation7], %s31
      %s33 = sshll.u32 [#allocation6], 4
      %s34 = int_to_ptr.vmem [resolvable:$true] %s33
      %39 = dma.hbm_to_vmem [thread:$0]  %s1, 24576, %s34, [#allocation7], 256, 256, 16
    $region9: #{tpu_custom_call.1} parent=1 // pred_fallthru
      _
    // Predicated region
    $region10: #{tpu_custom_call.1} parent=1 // pred_check
      _
    $region11: #{tpu_custom_call.1} parent=1 // pred_check_branch
      %41 = sbr.rel (0) target = $region13
    $region12: #{tpu_custom_call.1} parent=1 // pred_region
      _
    $region13: #{tpu_custom_call.1} parent=1 // pred_fallthru
      _
    // Predicated region
    $region14: #{tpu_custom_call.1} parent=1 // pred_check
      _
    $region15: #{tpu_custom_call.1} parent=1 // pred_check_branch
      %43 = sbr.rel (0) target = $region17
    $region16: #{tpu_custom_call.1} parent=1 // pred_region
      _
    $region17: #{tpu_custom_call.1} parent=1 // pred_fallthru
      _
    // Predicated region
    $region18: #{tpu_custom_call.1} parent=1 // pred_check
      _
    $region19: #{tpu_custom_call.1} parent=1 // pred_check_branch
      %45 = sbr.rel (0) target = $region21
    $region20: #{tpu_custom_call.1} parent=1 // pred_region
      _
    $region21: #{tpu_custom_call.1} parent=1 // pred_fallthru
      _
    // Predicated region
    $region22: #{tpu_custom_call.1} parent=1 // pred_check
      _
    $region23: #{tpu_custom_call.1} parent=1 // pred_check_branch
      %47 = sbr.rel (0) target = $region25
    $region24: #{tpu_custom_call.1} parent=1 // pred_region
      _
    $region25: #{tpu_custom_call.1} parent=1 // pred_fallthru
      _
    // Predicated region
    $region26: #{tpu_custom_call.1} parent=1 // pred_check
      _
    $region27: #{tpu_custom_call.1} parent=1 // pred_check_branch
      %49 = sbr.rel (0) target = $region29
    $region28: #{tpu_custom_call.1} parent=1 // pred_region
      _
    $region29: #{tpu_custom_call.1} parent=1 // pred_fallthru
      _
    // Predicated region
    $region30: #{tpu_custom_call.1} parent=1 // pred_check
      _
    $region31: #{tpu_custom_call.1} parent=1 // pred_check_branch
      %51 = sbr.rel (0) target = $region33
    $region32: #{tpu_custom_call.1} parent=1 // pred_region
      %52 = dma.done [#allocation5], 768
    $region33: #{tpu_custom_call.1} parent=1 // pred_fallthru
      _
    // Predicated region
    $region34: #{tpu_custom_call.1} parent=1 // pred_check
      _
    $region35: #{tpu_custom_call.1} parent=1 // pred_check_branch
      %54 = sbr.rel (0) target = $region37
    $region36: #{tpu_custom_call.1} parent=1 // pred_region
      %55 = dma.done [#allocation7], 24576
    $region37: #{tpu_custom_call.1} parent=1 // pred_fallthru
      _
    %v56 = vld [vmem:[#allocation4] sm:$0xff]
    %v57 = vld [vmem:[#allocation4 + $0x8] sm:$0xff]
    %v58 = vld [vmem:[#allocation4 + $0x10] sm:$0xff]
    %v59 = vld [vmem:[#allocation4 + $0x18] sm:$0xff]
    %v60 = vld [vmem:[#allocation4 + $0x20] sm:$0xff]
    %v61 = vld [vmem:[#allocation4 + $0x28] sm:$0xff]
    %v62 = vld [vmem:[#allocation6] sm:$0xff]
    %v63 = vld [vmem:[#allocation6 + $0x8] sm:$0xff]
    %v64 = vld [vmem:[#allocation6 + $0x10] sm:$0xff]
    %v65 = vld [vmem:[#allocation6 + $0x18] sm:$0xff]
    %v66 = vld [vmem:[#allocation6 + $0x20] sm:$0xff]
    %v67 = vld [vmem:[#allocation6 + $0x28] sm:$0xff]
    %v68 = vld [vmem:[#allocation6 + $0x30] sm:$0xff]
    %v69 = vld [vmem:[#allocation6 + $0x38] sm:$0xff]
    %v70 = vld [vmem:[#allocation6 + $0x40] sm:$0xff]
    %v71 = vld [vmem:[#allocation6 + $0x48] sm:$0xff]
    %v72 = vld [vmem:[#allocation6 + $0x50] sm:$0xff]
    %v73 = vld [vmem:[#allocation6 + $0x58] sm:$0xff]
    %v74 = vld [vmem:[#allocation6 + $0x60] sm:$0xff]
    %v75 = vld [vmem:[#allocation6 + $0x68] sm:$0xff]
    %v76 = vld [vmem:[#allocation6 + $0x70] sm:$0xff]
    %v77 = vld [vmem:[#allocation6 + $0x78] sm:$0xff]
    %v78 = vld [vmem:[#allocation6 + $0x80] sm:$0xff]
    %v79 = vld [vmem:[#allocation6 + $0x88] sm:$0xff]
    %v80 = vld [vmem:[#allocation6 + $0x90] sm:$0xff]
    %v81 = vld [vmem:[#allocation6 + $0x98] sm:$0xff]
    %v82 = vld [vmem:[#allocation6 + $0xa0] sm:$0xff]
    %v83 = vld [vmem:[#allocation6 + $0xa8] sm:$0xff]
    %v84 = vld [vmem:[#allocation6 + $0xb0] sm:$0xff]
    %v85 = vld [vmem:[#allocation6 + $0xb8] sm:$0xff]
    %v86 = vld [vmem:[#allocation6 + $0xc0] sm:$0xff]
    %v87 = vld [vmem:[#allocation6 + $0xc8] sm:$0xff]
    %v88 = vld [vmem:[#allocation6 + $0xd0] sm:$0xff]
    %v89 = vld [vmem:[#allocation6 + $0xd8] sm:$0xff]
    %v90 = vld [vmem:[#allocation6 + $0xe0] sm:$0xff]
    %v91 = vld [vmem:[#allocation6 + $0xe8] sm:$0xff]
    %v92 = vld [vmem:[#allocation6 + $0xf0] sm:$0xff]
    %v93 = vld [vmem:[#allocation6 + $0xf8] sm:$0xff]
    %v94 = vld [vmem:[#allocation6 + $0x100] sm:$0xff]
    %v95 = vld [vmem:[#allocation6 + $0x108] sm:$0xff]
    %v96 = vld [vmem:[#allocation6 + $0x110] sm:$0xff]
    %v97 = vld [vmem:[#allocation6 + $0x118] sm:$0xff]
    %v98 = vld [vmem:[#allocation6 + $0x120] sm:$0xff]
    %v99 = vld [vmem:[#allocation6 + $0x128] sm:$0xff]
    %v100 = vld [vmem:[#allocation6 + $0x130] sm:$0xff]
    %v101 = vld [vmem:[#allocation6 + $0x138] sm:$0xff]
    %v102 = vld [vmem:[#allocation6 + $0x140] sm:$0xff]
    %v103 = vld [vmem:[#allocation6 + $0x148] sm:$0xff]
    %v104 = vld [vmem:[#allocation6 + $0x150] sm:$0xff]
    %v105 = vld [vmem:[#allocation6 + $0x158] sm:$0xff]
    %v106 = vld [vmem:[#allocation6 + $0x160] sm:$0xff]
    %v107 = vld [vmem:[#allocation6 + $0x168] sm:$0xff]
    %v108 = vld [vmem:[#allocation6 + $0x170] sm:$0xff]
    %v109 = vld [vmem:[#allocation6 + $0x178] sm:$0xff]
    %v110 = vld [vmem:[#allocation6 + $0x180] sm:$0xff]
    %v111 = vld [vmem:[#allocation6 + $0x188] sm:$0xff]
    %v112 = vld [vmem:[#allocation6 + $0x190] sm:$0xff]
    %v113 = vld [vmem:[#allocation6 + $0x198] sm:$0xff]
    %v114 = vld [vmem:[#allocation6 + $0x1a0] sm:$0xff]
    %v115 = vld [vmem:[#allocation6 + $0x1a8] sm:$0xff]
    %v116 = vld [vmem:[#allocation6 + $0x1b0] sm:$0xff]
    %v117 = vld [vmem:[#allocation6 + $0x1b8] sm:$0xff]
    %v118 = vld [vmem:[#allocation6 + $0x1c0] sm:$0xff]
    %v119 = vld [vmem:[#allocation6 + $0x1c8] sm:$0xff]
    %v120 = vld [vmem:[#allocation6 + $0x1d0] sm:$0xff]
    %v121 = vld [vmem:[#allocation6 + $0x1d8] sm:$0xff]
    %v122 = vld [vmem:[#allocation6 + $0x1e0] sm:$0xff]
    %v123 = vld [vmem:[#allocation6 + $0x1e8] sm:$0xff]
    %v124 = vld [vmem:[#allocation6 + $0x1f0] sm:$0xff]
    %v125 = vld [vmem:[#allocation6 + $0x1f8] sm:$0xff]
    %v126 = vld [vmem:[#allocation6 + $0x200] sm:$0xff]
    %v127 = vld [vmem:[#allocation6 + $0x208] sm:$0xff]
    %v128 = vld [vmem:[#allocation6 + $0x210] sm:$0xff]
    %v129 = vld [vmem:[#allocation6 + $0x218] sm:$0xff]
    %v130 = vld [vmem:[#allocation6 + $0x220] sm:$0xff]
    %v131 = vld [vmem:[#allocation6 + $0x228] sm:$0xff]
    %v132 = vld [vmem:[#allocation6 + $0x230] sm:$0xff]
    %v133 = vld [vmem:[#allocation6 + $0x238] sm:$0xff]
    %v134 = vld [vmem:[#allocation6 + $0x240] sm:$0xff]
    %v135 = vld [vmem:[#allocation6 + $0x248] sm:$0xff]
    %v136 = vld [vmem:[#allocation6 + $0x250] sm:$0xff]
    %v137 = vld [vmem:[#allocation6 + $0x258] sm:$0xff]
    %v138 = vld [vmem:[#allocation6 + $0x260] sm:$0xff]
    %v139 = vld [vmem:[#allocation6 + $0x268] sm:$0xff]
    %v140 = vld [vmem:[#allocation6 + $0x270] sm:$0xff]
    %v141 = vld [vmem:[#allocation6 + $0x278] sm:$0xff]
    %v142 = vld [vmem:[#allocation6 + $0x280] sm:$0xff]
    %v143 = vld [vmem:[#allocation6 + $0x288] sm:$0xff]
    %v144 = vld [vmem:[#allocation6 + $0x290] sm:$0xff]
    %v145 = vld [vmem:[#allocation6 + $0x298] sm:$0xff]
    %v146 = vld [vmem:[#allocation6 + $0x2a0] sm:$0xff]
    %v147 = vld [vmem:[#allocation6 + $0x2a8] sm:$0xff]
    %v148 = vld [vmem:[#allocation6 + $0x2b0] sm:$0xff]
    %v149 = vld [vmem:[#allocation6 + $0x2b8] sm:$0xff]
    %v150 = vld [vmem:[#allocation6 + $0x2c0] sm:$0xff]
    %v151 = vld [vmem:[#allocation6 + $0x2c8] sm:$0xff]
    %v152 = vld [vmem:[#allocation6 + $0x2d0] sm:$0xff]
    %v153 = vld [vmem:[#allocation6 + $0x2d8] sm:$0xff]
    %v154 = vld [vmem:[#allocation6 + $0x2e0] sm:$0xff]
    %v155 = vld [vmem:[#allocation6 + $0x2e8] sm:$0xff]
    %v156 = vld [vmem:[#allocation6 + $0x2f0] sm:$0xff]
    %v157 = vld [vmem:[#allocation6 + $0x2f8] sm:$0xff]
    %v158 = vld [vmem:[#allocation6 + $0x300] sm:$0xff]
    %v159 = vld [vmem:[#allocation6 + $0x308] sm:$0xff]
    %v160 = vld [vmem:[#allocation6 + $0x310] sm:$0xff]
    %v161 = vld [vmem:[#allocation6 + $0x318] sm:$0xff]
    %v162 = vld [vmem:[#allocation6 + $0x320] sm:$0xff]
    %v163 = vld [vmem:[#allocation6 + $0x328] sm:$0xff]
    %v164 = vld [vmem:[#allocation6 + $0x330] sm:$0xff]
    %v165 = vld [vmem:[#allocation6 + $0x338] sm:$0xff]
    %v166 = vld [vmem:[#allocation6 + $0x340] sm:$0xff]
    %v167 = vld [vmem:[#allocation6 + $0x348] sm:$0xff]
    %v168 = vld [vmem:[#allocation6 + $0x350] sm:$0xff]
    %v169 = vld [vmem:[#allocation6 + $0x358] sm:$0xff]
    %v170 = vld [vmem:[#allocation6 + $0x360] sm:$0xff]
    %v171 = vld [vmem:[#allocation6 + $0x368] sm:$0xff]
    %v172 = vld [vmem:[#allocation6 + $0x370] sm:$0xff]
    %v173 = vld [vmem:[#allocation6 + $0x378] sm:$0xff]
    %v174 = vld [vmem:[#allocation6 + $0x380] sm:$0xff]
    %v175 = vld [vmem:[#allocation6 + $0x388] sm:$0xff]
    %v176 = vld [vmem:[#allocation6 + $0x390] sm:$0xff]
    %v177 = vld [vmem:[#allocation6 + $0x398] sm:$0xff]
    %v178 = vld [vmem:[#allocation6 + $0x3a0] sm:$0xff]
    %v179 = vld [vmem:[#allocation6 + $0x3a8] sm:$0xff]
    %v180 = vld [vmem:[#allocation6 + $0x3b0] sm:$0xff]
    %v181 = vld [vmem:[#allocation6 + $0x3b8] sm:$0xff]
    %v182 = vld [vmem:[#allocation6 + $0x3c0] sm:$0xff]
    %v183 = vld [vmem:[#allocation6 + $0x3c8] sm:$0xff]
    %v184 = vld [vmem:[#allocation6 + $0x3d0] sm:$0xff]
    %v185 = vld [vmem:[#allocation6 + $0x3d8] sm:$0xff]
    %v186 = vld [vmem:[#allocation6 + $0x3e0] sm:$0xff]
    %v187 = vld [vmem:[#allocation6 + $0x3e8] sm:$0xff]
    %v188 = vld [vmem:[#allocation6 + $0x3f0] sm:$0xff]
    %v189 = vld [vmem:[#allocation6 + $0x3f8] sm:$0xff]
    %v190 = vld [vmem:[#allocation6 + $0x400] sm:$0xff]
    %v191 = vld [vmem:[#allocation6 + $0x408] sm:$0xff]
    %v192 = vld [vmem:[#allocation6 + $0x410] sm:$0xff]
    %v193 = vld [vmem:[#allocation6 + $0x418] sm:$0xff]
    %v194 = vld [vmem:[#allocation6 + $0x420] sm:$0xff]
    %v195 = vld [vmem:[#allocation6 + $0x428] sm:$0xff]
    %v196 = vld [vmem:[#allocation6 + $0x430] sm:$0xff]
    %v197 = vld [vmem:[#allocation6 + $0x438] sm:$0xff]
    %v198 = vld [vmem:[#allocation6 + $0x440] sm:$0xff]
    %v199 = vld [vmem:[#allocation6 + $0x448] sm:$0xff]
    %v200 = vld [vmem:[#allocation6 + $0x450] sm:$0xff]
    %v201 = vld [vmem:[#allocation6 + $0x458] sm:$0xff]
    %v202 = vld [vmem:[#allocation6 + $0x460] sm:$0xff]
    %v203 = vld [vmem:[#allocation6 + $0x468] sm:$0xff]
    %v204 = vld [vmem:[#allocation6 + $0x470] sm:$0xff]
    %v205 = vld [vmem:[#allocation6 + $0x478] sm:$0xff]
    %v206 = vld [vmem:[#allocation6 + $0x480] sm:$0xff]
    %v207 = vld [vmem:[#allocation6 + $0x488] sm:$0xff]
    %v208 = vld [vmem:[#allocation6 + $0x490] sm:$0xff]
    %v209 = vld [vmem:[#allocation6 + $0x498] sm:$0xff]
    %v210 = vld [vmem:[#allocation6 + $0x4a0] sm:$0xff]
    %v211 = vld [vmem:[#allocation6 + $0x4a8] sm:$0xff]
    %v212 = vld [vmem:[#allocation6 + $0x4b0] sm:$0xff]
    %v213 = vld [vmem:[#allocation6 + $0x4b8] sm:$0xff]
    %v214 = vld [vmem:[#allocation6 + $0x4c0] sm:$0xff]
    %v215 = vld [vmem:[#allocation6 + $0x4c8] sm:$0xff]
    %v216 = vld [vmem:[#allocation6 + $0x4d0] sm:$0xff]
    %v217 = vld [vmem:[#allocation6 + $0x4d8] sm:$0xff]
    %v218 = vld [vmem:[#allocation6 + $0x4e0] sm:$0xff]
    %v219 = vld [vmem:[#allocation6 + $0x4e8] sm:$0xff]
    %v220 = vld [vmem:[#allocation6 + $0x4f0] sm:$0xff]
    %v221 = vld [vmem:[#allocation6 + $0x4f8] sm:$0xff]
    %v222 = vld [vmem:[#allocation6 + $0x500] sm:$0xff]
    %v223 = vld [vmem:[#allocation6 + $0x508] sm:$0xff]
    %v224 = vld [vmem:[#allocation6 + $0x510] sm:$0xff]
    %v225 = vld [vmem:[#allocation6 + $0x518] sm:$0xff]
    %v226 = vld [vmem:[#allocation6 + $0x520] sm:$0xff]
    %v227 = vld [vmem:[#allocation6 + $0x528] sm:$0xff]
    %v228 = vld [vmem:[#allocation6 + $0x530] sm:$0xff]
    %v229 = vld [vmem:[#allocation6 + $0x538] sm:$0xff]
    %v230 = vld [vmem:[#allocation6 + $0x540] sm:$0xff]
    %v231 = vld [vmem:[#allocation6 + $0x548] sm:$0xff]
    %v232 = vld [vmem:[#allocation6 + $0x550] sm:$0xff]
    %v233 = vld [vmem:[#allocation6 + $0x558] sm:$0xff]
    %v234 = vld [vmem:[#allocation6 + $0x560] sm:$0xff]
    %v235 = vld [vmem:[#allocation6 + $0x568] sm:$0xff]
    %v236 = vld [vmem:[#allocation6 + $0x570] sm:$0xff]
    %v237 = vld [vmem:[#allocation6 + $0x578] sm:$0xff]
    %v238 = vld [vmem:[#allocation6 + $0x580] sm:$0xff]
    %v239 = vld [vmem:[#allocation6 + $0x588] sm:$0xff]
    %v240 = vld [vmem:[#allocation6 + $0x590] sm:$0xff]
    %v241 = vld [vmem:[#allocation6 + $0x598] sm:$0xff]
    %v242 = vld [vmem:[#allocation6 + $0x5a0] sm:$0xff]
    %v243 = vld [vmem:[#allocation6 + $0x5a8] sm:$0xff]
    %v244 = vld [vmem:[#allocation6 + $0x5b0] sm:$0xff]
    %v245 = vld [vmem:[#allocation6 + $0x5b8] sm:$0xff]
    %v246 = vld [vmem:[#allocation6 + $0x5c0] sm:$0xff]
    %v247 = vld [vmem:[#allocation6 + $0x5c8] sm:$0xff]
    %v248 = vld [vmem:[#allocation6 + $0x5d0] sm:$0xff]
    %v249 = vld [vmem:[#allocation6 + $0x5d8] sm:$0xff]
    %v250 = vld [vmem:[#allocation6 + $0x5e0] sm:$0xff]
    %v251 = vld [vmem:[#allocation6 + $0x5e8] sm:$0xff]
    %v252 = vld [vmem:[#allocation6 + $0x5f0] sm:$0xff]
    %v253 = vld [vmem:[#allocation6 + $0x5f8] sm:$0xff]
    %v254 = vld [vmem:[%s2] sm:$0xf]
    %v256 = vlaneseq
    %v257 = vshrl.u32 %v256, 7
    %v258 = vsub.s32 0, %v257
    %v259 = vrot.slane %v254, %v258
    %v260 = vlaneseq
    %v261 = vshrl.u32 %v260, 7
    %v262 = vsub.s32 1, %v261
    %v263 = vrot.slane %v254, %v262
    %v264 = vlaneseq
    %v265 = vshrl.u32 %v264, 7
    %v266 = vsub.s32 2, %v265
    %v267 = vrot.slane %v254, %v266
    %v268 = vlaneseq
    %v269 = vshrl.u32 %v268, 7
    %v270 = vsub.s32 3, %v269
    %v271 = vrot.slane %v254, %v270
    %v282 = vunpack.c.l.b16 %v56
    %v283 = vunpack.c.h.b16 %v56
    %v284 = vunpack.c.l.b16 %v57
    %v285 = vunpack.c.h.b16 %v57
    %v286 = vunpack.c.l.b16 %v58
    %v287 = vunpack.c.h.b16 %v58
    %v288 = vunpack.c.l.b16 %v59
    %v289 = vunpack.c.h.b16 %v59
    %v290 = vunpack.c.l.b16 %v60
    %v291 = vunpack.c.h.b16 %v60
    %v292 = vunpack.c.l.b16 %v61
    %v293 = vunpack.c.h.b16 %v61
    %v294 = vpack.c.b16 %v288, %v282
    %v295 = vpack.c.b16 %v289, %v283
    %v296 = vpack.c.b16 %v290, %v284
    %v297 = vpack.c.b16 %v291, %v285
    %v298 = vpack.c.b16 %v292, %v286
    %v299 = vpack.c.b16 %v293, %v287
    %v498 = vunpack.c.l.b16 %v62
    %v499 = vunpack.c.h.b16 %v62
    %v500 = vunpack.c.l.b16 %v63
    %v501 = vunpack.c.h.b16 %v63
    %v502 = vunpack.c.l.b16 %v64
    %v503 = vunpack.c.h.b16 %v64
    %v504 = vunpack.c.l.b16 %v65
    %v505 = vunpack.c.h.b16 %v65
    %v506 = vunpack.c.l.b16 %v66
    %v507 = vunpack.c.h.b16 %v66
    %v508 = vunpack.c.l.b16 %v67
    %v509 = vunpack.c.h.b16 %v67
    %v510 = vunpack.c.l.b16 %v68
    %v511 = vunpack.c.h.b16 %v68
    %v512 = vunpack.c.l.b16 %v69
    %v513 = vunpack.c.h.b16 %v69
    %v514 = vunpack.c.l.b16 %v70
    %v515 = vunpack.c.h.b16 %v70
    %v516 = vunpack.c.l.b16 %v71
    %v517 = vunpack.c.h.b16 %v71
    %v518 = vunpack.c.l.b16 %v72
    %v519 = vunpack.c.h.b16 %v72
    %v520 = vunpack.c.l.b16 %v73
    %v521 = vunpack.c.h.b16 %v73
    %v522 = vunpack.c.l.b16 %v74
    %v523 = vunpack.c.h.b16 %v74
    %v524 = vunpack.c.l.b16 %v75
    %v525 = vunpack.c.h.b16 %v75
    %v526 = vunpack.c.l.b16 %v76
    %v527 = vunpack.c.h.b16 %v76
    %v528 = vunpack.c.l.b16 %v77
    %v529 = vunpack.c.h.b16 %v77
    %v530 = vunpack.c.l.b16 %v78
    %v531 = vunpack.c.h.b16 %v78
    %v532 = vunpack.c.l.b16 %v79
    %v533 = vunpack.c.h.b16 %v79
    %v534 = vunpack.c.l.b16 %v80
    %v535 = vunpack.c.h.b16 %v80
    %v536 = vunpack.c.l.b16 %v81
    %v537 = vunpack.c.h.b16 %v81
    %v538 = vunpack.c.l.b16 %v82
    %v539 = vunpack.c.h.b16 %v82
    %v540 = vunpack.c.l.b16 %v83
    %v541 = vunpack.c.h.b16 %v83
    %v542 = vunpack.c.l.b16 %v84
    %v543 = vunpack.c.h.b16 %v84
    %v544 = vunpack.c.l.b16 %v85
    %v545 = vunpack.c.h.b16 %v85
    %v546 = vunpack.c.l.b16 %v86
    %v547 = vunpack.c.h.b16 %v86
    %v548 = vunpack.c.l.b16 %v87
    %v549 = vunpack.c.h.b16 %v87
    %v550 = vunpack.c.l.b16 %v88
    %v551 = vunpack.c.h.b16 %v88
    %v552 = vunpack.c.l.b16 %v89
    %v553 = vunpack.c.h.b16 %v89
    %v554 = vunpack.c.l.b16 %v90
    %v555 = vunpack.c.h.b16 %v90
    %v556 = vunpack.c.l.b16 %v91
    %v557 = vunpack.c.h.b16 %v91
    %v558 = vunpack.c.l.b16 %v92
    %v559 = vunpack.c.h.b16 %v92
    %v560 = vunpack.c.l.b16 %v93
    %v561 = vunpack.c.h.b16 %v93
    %v562 = vunpack.c.l.b16 %v94
    %v563 = vunpack.c.h.b16 %v94
    %v564 = vunpack.c.l.b16 %v95
    %v565 = vunpack.c.h.b16 %v95
    %v566 = vunpack.c.l.b16 %v96
    %v567 = vunpack.c.h.b16 %v96
    %v568 = vunpack.c.l.b16 %v97
    %v569 = vunpack.c.h.b16 %v97
    %v570 = vunpack.c.l.b16 %v98
    %v571 = vunpack.c.h.b16 %v98
    %v572 = vunpack.c.l.b16 %v99
    %v573 = vunpack.c.h.b16 %v99
    %v574 = vunpack.c.l.b16 %v100
    %v575 = vunpack.c.h.b16 %v100
    %v576 = vunpack.c.l.b16 %v101
    %v577 = vunpack.c.h.b16 %v101
    %v578 = vunpack.c.l.b16 %v102
    %v579 = vunpack.c.h.b16 %v102
    %v580 = vunpack.c.l.b16 %v103
    %v581 = vunpack.c.h.b16 %v103
    %v582 = vunpack.c.l.b16 %v104
    %v583 = vunpack.c.h.b16 %v104
    %v584 = vunpack.c.l.b16 %v105
    %v585 = vunpack.c.h.b16 %v105
    %v586 = vunpack.c.l.b16 %v106
    %v587 = vunpack.c.h.b16 %v106
    %v588 = vunpack.c.l.b16 %v107
    %v589 = vunpack.c.h.b16 %v107
    %v590 = vunpack.c.l.b16 %v108
    %v591 = vunpack.c.h.b16 %v108
    %v592 = vunpack.c.l.b16 %v109
    %v593 = vunpack.c.h.b16 %v109
    %v594 = vunpack.c.l.b16 %v110
    %v595 = vunpack.c.h.b16 %v110
    %v596 = vunpack.c.l.b16 %v111
    %v597 = vunpack.c.h.b16 %v111
    %v598 = vunpack.c.l.b16 %v112
    %v599 = vunpack.c.h.b16 %v112
    %v600 = vunpack.c.l.b16 %v113
    %v601 = vunpack.c.h.b16 %v113
    %v602 = vunpack.c.l.b16 %v114
    %v603 = vunpack.c.h.b16 %v114
    %v604 = vunpack.c.l.b16 %v115
    %v605 = vunpack.c.h.b16 %v115
    %v606 = vunpack.c.l.b16 %v116
    %v607 = vunpack.c.h.b16 %v116
    %v608 = vunpack.c.l.b16 %v117
    %v609 = vunpack.c.h.b16 %v117
    %v610 = vunpack.c.l.b16 %v118
    %v611 = vunpack.c.h.b16 %v118
    %v612 = vunpack.c.l.b16 %v119
    %v613 = vunpack.c.h.b16 %v119
    %v614 = vunpack.c.l.b16 %v120
    %v615 = vunpack.c.h.b16 %v120
    %v616 = vunpack.c.l.b16 %v121
    %v617 = vunpack.c.h.b16 %v121
    %v618 = vunpack.c.l.b16 %v122
    %v619 = vunpack.c.h.b16 %v122
    %v620 = vunpack.c.l.b16 %v123
    %v621 = vunpack.c.h.b16 %v123
    %v622 = vunpack.c.l.b16 %v124
    %v623 = vunpack.c.h.b16 %v124
    %v624 = vunpack.c.l.b16 %v125
    %v625 = vunpack.c.h.b16 %v125
    %v626 = vunpack.c.l.b16 %v126
    %v627 = vunpack.c.h.b16 %v126
    %v628 = vunpack.c.l.b16 %v127
    %v629 = vunpack.c.h.b16 %v127
    %v630 = vunpack.c.l.b16 %v128
    %v631 = vunpack.c.h.b16 %v128
    %v632 = vunpack.c.l.b16 %v129
    %v633 = vunpack.c.h.b16 %v129
    %v634 = vunpack.c.l.b16 %v130
    %v635 = vunpack.c.h.b16 %v130
    %v636 = vunpack.c.l.b16 %v131
    %v637 = vunpack.c.h.b16 %v131
    %v638 = vunpack.c.l.b16 %v132
    %v639 = vunpack.c.h.b16 %v132
    %v640 = vunpack.c.l.b16 %v133
    %v641 = vunpack.c.h.b16 %v133
    %v642 = vunpack.c.l.b16 %v134
    %v643 = vunpack.c.h.b16 %v134
    %v644 = vunpack.c.l.b16 %v135
    %v645 = vunpack.c.h.b16 %v135
    %v646 = vunpack.c.l.b16 %v136
    %v647 = vunpack.c.h.b16 %v136
    %v648 = vunpack.c.l.b16 %v137
    %v649 = vunpack.c.h.b16 %v137
    %v650 = vunpack.c.l.b16 %v138
    %v651 = vunpack.c.h.b16 %v138
    %v652 = vunpack.c.l.b16 %v139
    %v653 = vunpack.c.h.b16 %v139
    %v654 = vunpack.c.l.b16 %v140
    %v655 = vunpack.c.h.b16 %v140
    %v656 = vunpack.c.l.b16 %v141
    %v657 = vunpack.c.h.b16 %v141
    %v658 = vunpack.c.l.b16 %v142
    %v659 = vunpack.c.h.b16 %v142
    %v660 = vunpack.c.l.b16 %v143
    %v661 = vunpack.c.h.b16 %v143
    %v662 = vunpack.c.l.b16 %v144
    %v663 = vunpack.c.h.b16 %v144
    %v664 = vunpack.c.l.b16 %v145
    %v665 = vunpack.c.h.b16 %v145
    %v666 = vunpack.c.l.b16 %v146
    %v667 = vunpack.c.h.b16 %v146
    %v668 = vunpack.c.l.b16 %v147
    %v669 = vunpack.c.h.b16 %v147
    %v670 = vunpack.c.l.b16 %v148
    %v671 = vunpack.c.h.b16 %v148
    %v672 = vunpack.c.l.b16 %v149
    %v673 = vunpack.c.h.b16 %v149
    %v674 = vunpack.c.l.b16 %v150
    %v675 = vunpack.c.h.b16 %v150
    %v676 = vunpack.c.l.b16 %v151
    %v677 = vunpack.c.h.b16 %v151
    %v678 = vunpack.c.l.b16 %v152
    %v679 = vunpack.c.h.b16 %v152
    %v680 = vunpack.c.l.b16 %v153
    %v681 = vunpack.c.h.b16 %v153
    %v682 = vunpack.c.l.b16 %v154
    %v683 = vunpack.c.h.b16 %v154
    %v684 = vunpack.c.l.b16 %v155
    %v685 = vunpack.c.h.b16 %v155
    %v686 = vunpack.c.l.b16 %v156
    %v687 = vunpack.c.h.b16 %v156
    %v688 = vunpack.c.l.b16 %v157
    %v689 = vunpack.c.h.b16 %v157
    %v690 = vunpack.c.l.b16 %v158
    %v691 = vunpack.c.h.b16 %v158
    %v692 = vunpack.c.l.b16 %v159
    %v693 = vunpack.c.h.b16 %v159
    %v694 = vunpack.c.l.b16 %v160
    %v695 = vunpack.c.h.b16 %v160
    %v696 = vunpack.c.l.b16 %v161
    %v697 = vunpack.c.h.b16 %v161
    %v698 = vunpack.c.l.b16 %v162
    %v699 = vunpack.c.h.b16 %v162
    %v700 = vunpack.c.l.b16 %v163
    %v701 = vunpack.c.h.b16 %v163
    %v702 = vunpack.c.l.b16 %v164
    %v703 = vunpack.c.h.b16 %v164
    %v704 = vunpack.c.l.b16 %v165
    %v705 = vunpack.c.h.b16 %v165
    %v706 = vunpack.c.l.b16 %v166
    %v707 = vunpack.c.h.b16 %v166
    %v708 = vunpack.c.l.b16 %v167
    %v709 = vunpack.c.h.b16 %v167
    %v710 = vunpack.c.l.b16 %v168
    %v711 = vunpack.c.h.b16 %v168
    %v712 = vunpack.c.l.b16 %v169
    %v713 = vunpack.c.h.b16 %v169
    %v714 = vunpack.c.l.b16 %v170
    %v715 = vunpack.c.h.b16 %v170
    %v716 = vunpack.c.l.b16 %v171
    %v717 = vunpack.c.h.b16 %v171
    %v718 = vunpack.c.l.b16 %v172
    %v719 = vunpack.c.h.b16 %v172
    %v720 = vunpack.c.l.b16 %v173
    %v721 = vunpack.c.h.b16 %v173
    %v722 = vunpack.c.l.b16 %v174
    %v723 = vunpack.c.h.b16 %v174
    %v724 = vunpack.c.l.b16 %v175
    %v725 = vunpack.c.h.b16 %v175
    %v726 = vunpack.c.l.b16 %v176
    %v727 = vunpack.c.h.b16 %v176
    %v728 = vunpack.c.l.b16 %v177
    %v729 = vunpack.c.h.b16 %v177
    %v730 = vunpack.c.l.b16 %v178
    %v731 = vunpack.c.h.b16 %v178
    %v732 = vunpack.c.l.b16 %v179
    %v733 = vunpack.c.h.b16 %v179
    %v734 = vunpack.c.l.b16 %v180
    %v735 = vunpack.c.h.b16 %v180
    %v736 = vunpack.c.l.b16 %v181
    %v737 = vunpack.c.h.b16 %v181
    %v738 = vunpack.c.l.b16 %v182
    %v739 = vunpack.c.h.b16 %v182
    %v740 = vunpack.c.l.b16 %v183
    %v741 = vunpack.c.h.b16 %v183
    %v742 = vunpack.c.l.b16 %v184
    %v743 = vunpack.c.h.b16 %v184
    %v744 = vunpack.c.l.b16 %v185
    %v745 = vunpack.c.h.b16 %v185
    %v746 = vunpack.c.l.b16 %v186
    %v747 = vunpack.c.h.b16 %v186
    %v748 = vunpack.c.l.b16 %v187
    %v749 = vunpack.c.h.b16 %v187
    %v750 = vunpack.c.l.b16 %v188
    %v751 = vunpack.c.h.b16 %v188
    %v752 = vunpack.c.l.b16 %v189
    %v753 = vunpack.c.h.b16 %v189
    %v754 = vunpack.c.l.b16 %v190
    %v755 = vunpack.c.h.b16 %v190
    %v756 = vunpack.c.l.b16 %v191
    %v757 = vunpack.c.h.b16 %v191
    %v758 = vunpack.c.l.b16 %v192
    %v759 = vunpack.c.h.b16 %v192
    %v760 = vunpack.c.l.b16 %v193
    %v761 = vunpack.c.h.b16 %v193
    %v762 = vunpack.c.l.b16 %v194
    %v763 = vunpack.c.h.b16 %v194
    %v764 = vunpack.c.l.b16 %v195
    %v765 = vunpack.c.h.b16 %v195
    %v766 = vunpack.c.l.b16 %v196
    %v767 = vunpack.c.h.b16 %v196
    %v768 = vunpack.c.l.b16 %v197
    %v769 = vunpack.c.h.b16 %v197
    %v770 = vunpack.c.l.b16 %v198
    %v771 = vunpack.c.h.b16 %v198
    %v772 = vunpack.c.l.b16 %v199
    %v773 = vunpack.c.h.b16 %v199
    %v774 = vunpack.c.l.b16 %v200
    %v775 = vunpack.c.h.b16 %v200
    %v776 = vunpack.c.l.b16 %v201
    %v777 = vunpack.c.h.b16 %v201
    %v778 = vunpack.c.l.b16 %v202
    %v779 = vunpack.c.h.b16 %v202
    %v780 = vunpack.c.l.b16 %v203
    %v781 = vunpack.c.h.b16 %v203
    %v782 = vunpack.c.l.b16 %v204
    %v783 = vunpack.c.h.b16 %v204
    %v784 = vunpack.c.l.b16 %v205
    %v785 = vunpack.c.h.b16 %v205
    %v786 = vunpack.c.l.b16 %v206
    %v787 = vunpack.c.h.b16 %v206
    %v788 = vunpack.c.l.b16 %v207
    %v789 = vunpack.c.h.b16 %v207
    %v790 = vunpack.c.l.b16 %v208
    %v791 = vunpack.c.h.b16 %v208
    %v792 = vunpack.c.l.b16 %v209
    %v793 = vunpack.c.h.b16 %v209
    %v794 = vunpack.c.l.b16 %v210
    %v795 = vunpack.c.h.b16 %v210
    %v796 = vunpack.c.l.b16 %v211
    %v797 = vunpack.c.h.b16 %v211
    %v798 = vunpack.c.l.b16 %v212
    %v799 = vunpack.c.h.b16 %v212
    %v800 = vunpack.c.l.b16 %v213
    %v801 = vunpack.c.h.b16 %v213
    %v802 = vunpack.c.l.b16 %v214
    %v803 = vunpack.c.h.b16 %v214
    %v804 = vunpack.c.l.b16 %v215
    %v805 = vunpack.c.h.b16 %v215
    %v806 = vunpack.c.l.b16 %v216
    %v807 = vunpack.c.h.b16 %v216
    %v808 = vunpack.c.l.b16 %v217
    %v809 = vunpack.c.h.b16 %v217
    %v810 = vunpack.c.l.b16 %v218
    %v811 = vunpack.c.h.b16 %v218
    %v812 = vunpack.c.l.b16 %v219
    %v813 = vunpack.c.h.b16 %v219
    %v814 = vunpack.c.l.b16 %v220
    %v815 = vunpack.c.h.b16 %v220
    %v816 = vunpack.c.l.b16 %v221
    %v817 = vunpack.c.h.b16 %v221
    %v818 = vunpack.c.l.b16 %v222
    %v819 = vunpack.c.h.b16 %v222
    %v820 = vunpack.c.l.b16 %v223
    %v821 = vunpack.c.h.b16 %v223
    %v822 = vunpack.c.l.b16 %v224
    %v823 = vunpack.c.h.b16 %v224
    %v824 = vunpack.c.l.b16 %v225
    %v825 = vunpack.c.h.b16 %v225
    %v826 = vunpack.c.l.b16 %v226
    %v827 = vunpack.c.h.b16 %v226
    %v828 = vunpack.c.l.b16 %v227
    %v829 = vunpack.c.h.b16 %v227
    %v830 = vunpack.c.l.b16 %v228
    %v831 = vunpack.c.h.b16 %v228
    %v832 = vunpack.c.l.b16 %v229
    %v833 = vunpack.c.h.b16 %v229
    %v834 = vunpack.c.l.b16 %v230
    %v835 = vunpack.c.h.b16 %v230
    %v836 = vunpack.c.l.b16 %v231
    %v837 = vunpack.c.h.b16 %v231
    %v838 = vunpack.c.l.b16 %v232
    %v839 = vunpack.c.h.b16 %v232
    %v840 = vunpack.c.l.b16 %v233
    %v841 = vunpack.c.h.b16 %v233
    %v842 = vunpack.c.l.b16 %v234
    %v843 = vunpack.c.h.b16 %v234
    %v844 = vunpack.c.l.b16 %v235
    %v845 = vunpack.c.h.b16 %v235
    %v846 = vunpack.c.l.b16 %v236
    %v847 = vunpack.c.h.b16 %v236
    %v848 = vunpack.c.l.b16 %v237
    %v849 = vunpack.c.h.b16 %v237
    %v850 = vunpack.c.l.b16 %v238
    %v851 = vunpack.c.h.b16 %v238
    %v852 = vunpack.c.l.b16 %v239
    %v853 = vunpack.c.h.b16 %v239
    %v854 = vunpack.c.l.b16 %v240
    %v855 = vunpack.c.h.b16 %v240
    %v856 = vunpack.c.l.b16 %v241
    %v857 = vunpack.c.h.b16 %v241
    %v858 = vunpack.c.l.b16 %v242
    %v859 = vunpack.c.h.b16 %v242
    %v860 = vunpack.c.l.b16 %v243
    %v861 = vunpack.c.h.b16 %v243
    %v862 = vunpack.c.l.b16 %v244
    %v863 = vunpack.c.h.b16 %v244
    %v864 = vunpack.c.l.b16 %v245
    %v865 = vunpack.c.h.b16 %v245
    %v866 = vunpack.c.l.b16 %v246
    %v867 = vunpack.c.h.b16 %v246
    %v868 = vunpack.c.l.b16 %v247
    %v869 = vunpack.c.h.b16 %v247
    %v870 = vunpack.c.l.b16 %v248
    %v871 = vunpack.c.h.b16 %v248
    %v872 = vunpack.c.l.b16 %v249
    %v873 = vunpack.c.h.b16 %v249
    %v874 = vunpack.c.l.b16 %v250
    %v875 = vunpack.c.h.b16 %v250
    %v876 = vunpack.c.l.b16 %v251
    %v877 = vunpack.c.h.b16 %v251
    %v878 = vunpack.c.l.b16 %v252
    %v879 = vunpack.c.h.b16 %v252
    %v880 = vunpack.c.l.b16 %v253
    %v881 = vunpack.c.h.b16 %v253
    %v882 = vpack.c.b16 %v502, %v498
    %v883 = vpack.c.b16 %v503, %v499
    %v884 = vpack.c.b16 %v504, %v500
    %v885 = vpack.c.b16 %v505, %v501
    %v886 = vpack.c.b16 %v510, %v506
    %v887 = vpack.c.b16 %v511, %v507
    %v888 = vpack.c.b16 %v512, %v508
    %v889 = vpack.c.b16 %v513, %v509
    %v890 = vpack.c.b16 %v518, %v514
    %v891 = vpack.c.b16 %v519, %v515
    %v892 = vpack.c.b16 %v520, %v516
    %v893 = vpack.c.b16 %v521, %v517
    %v894 = vpack.c.b16 %v526, %v522
    %v895 = vpack.c.b16 %v527, %v523
    %v896 = vpack.c.b16 %v528, %v524
    %v897 = vpack.c.b16 %v529, %v525
    %v898 = vpack.c.b16 %v534, %v530
    %v899 = vpack.c.b16 %v535, %v531
    %v900 = vpack.c.b16 %v536, %v532
    %v901 = vpack.c.b16 %v537, %v533
    %v902 = vpack.c.b16 %v542, %v538
    %v903 = vpack.c.b16 %v543, %v539
    %v904 = vpack.c.b16 %v544, %v540
    %v905 = vpack.c.b16 %v545, %v541
    %v906 = vpack.c.b16 %v550, %v546
    %v907 = vpack.c.b16 %v551, %v547
    %v908 = vpack.c.b16 %v552, %v548
    %v909 = vpack.c.b16 %v553, %v549
    %v910 = vpack.c.b16 %v558, %v554
    %v911 = vpack.c.b16 %v559, %v555
    %v912 = vpack.c.b16 %v560, %v556
    %v913 = vpack.c.b16 %v561, %v557
    %v914 = vpack.c.b16 %v566, %v562
    %v915 = vpack.c.b16 %v567, %v563
    %v916 = vpack.c.b16 %v568, %v564
    %v917 = vpack.c.b16 %v569, %v565
    %v918 = vpack.c.b16 %v574, %v570
    %v919 = vpack.c.b16 %v575, %v571
    %v920 = vpack.c.b16 %v576, %v572
    %v921 = vpack.c.b16 %v577, %v573
    %v922 = vpack.c.b16 %v582, %v578
    %v923 = vpack.c.b16 %v583, %v579
    %v924 = vpack.c.b16 %v584, %v580
    %v925 = vpack.c.b16 %v585, %v581
    %v926 = vpack.c.b16 %v590, %v586
    %v927 = vpack.c.b16 %v591, %v587
    %v928 = vpack.c.b16 %v592, %v588
    %v929 = vpack.c.b16 %v593, %v589
    %v930 = vpack.c.b16 %v598, %v594
    %v931 = vpack.c.b16 %v599, %v595
    %v932 = vpack.c.b16 %v600, %v596
    %v933 = vpack.c.b16 %v601, %v597
    %v934 = vpack.c.b16 %v606, %v602
    %v935 = vpack.c.b16 %v607, %v603
    %v936 = vpack.c.b16 %v608, %v604
    %v937 = vpack.c.b16 %v609, %v605
    %v938 = vpack.c.b16 %v614, %v610
    %v939 = vpack.c.b16 %v615, %v611
    %v940 = vpack.c.b16 %v616, %v612
    %v941 = vpack.c.b16 %v617, %v613
    %v942 = vpack.c.b16 %v622, %v618
    %v943 = vpack.c.b16 %v623, %v619
    %v944 = vpack.c.b16 %v624, %v620
    %v945 = vpack.c.b16 %v625, %v621
    %v946 = vpack.c.b16 %v630, %v626
    %v947 = vpack.c.b16 %v631, %v627
    %v948 = vpack.c.b16 %v632, %v628
    %v949 = vpack.c.b16 %v633, %v629
    %v950 = vpack.c.b16 %v638, %v634
    %v951 = vpack.c.b16 %v639, %v635
    %v952 = vpack.c.b16 %v640, %v636
    %v953 = vpack.c.b16 %v641, %v637
    %v954 = vpack.c.b16 %v646, %v642
    %v955 = vpack.c.b16 %v647, %v643
    %v956 = vpack.c.b16 %v648, %v644
    %v957 = vpack.c.b16 %v649, %v645
    %v958 = vpack.c.b16 %v654, %v650
    %v959 = vpack.c.b16 %v655, %v651
    %v960 = vpack.c.b16 %v656, %v652
    %v961 = vpack.c.b16 %v657, %v653
    %v962 = vpack.c.b16 %v662, %v658
    %v963 = vpack.c.b16 %v663, %v659
    %v964 = vpack.c.b16 %v664, %v660
    %v965 = vpack.c.b16 %v665, %v661
    %v966 = vpack.c.b16 %v670, %v666
    %v967 = vpack.c.b16 %v671, %v667
    %v968 = vpack.c.b16 %v672, %v668
    %v969 = vpack.c.b16 %v673, %v669
    %v970 = vpack.c.b16 %v678, %v674
    %v971 = vpack.c.b16 %v679, %v675
    %v972 = vpack.c.b16 %v680, %v676
    %v973 = vpack.c.b16 %v681, %v677
    %v974 = vpack.c.b16 %v686, %v682
    %v975 = vpack.c.b16 %v687, %v683
    %v976 = vpack.c.b16 %v688, %v684
    %v977 = vpack.c.b16 %v689, %v685
    %v978 = vpack.c.b16 %v694, %v690
    %v979 = vpack.c.b16 %v695, %v691
    %v980 = vpack.c.b16 %v696, %v692
    %v981 = vpack.c.b16 %v697, %v693
    %v982 = vpack.c.b16 %v702, %v698
    %v983 = vpack.c.b16 %v703, %v699
    %v984 = vpack.c.b16 %v704, %v700
    %v985 = vpack.c.b16 %v705, %v701
    %v986 = vpack.c.b16 %v710, %v706
    %v987 = vpack.c.b16 %v711, %v707
    %v988 = vpack.c.b16 %v712, %v708
    %v989 = vpack.c.b16 %v713, %v709
    %v990 = vpack.c.b16 %v718, %v714
    %v991 = vpack.c.b16 %v719, %v715
    %v992 = vpack.c.b16 %v720, %v716
    %v993 = vpack.c.b16 %v721, %v717
    %v994 = vpack.c.b16 %v726, %v722
    %v995 = vpack.c.b16 %v727, %v723
    %v996 = vpack.c.b16 %v728, %v724
    %v997 = vpack.c.b16 %v729, %v725
    %v998 = vpack.c.b16 %v734, %v730
    %v999 = vpack.c.b16 %v735, %v731
    %v1000 = vpack.c.b16 %v736, %v732
    %v1001 = vpack.c.b16 %v737, %v733
    %v1002 = vpack.c.b16 %v742, %v738
    %v1003 = vpack.c.b16 %v743, %v739
    %v1004 = vpack.c.b16 %v744, %v740
    %v1005 = vpack.c.b16 %v745, %v741
    %v1006 = vpack.c.b16 %v750, %v746
    %v1007 = vpack.c.b16 %v751, %v747
    %v1008 = vpack.c.b16 %v752, %v748
    %v1009 = vpack.c.b16 %v753, %v749
    %v1010 = vpack.c.b16 %v758, %v754
    %v1011 = vpack.c.b16 %v759, %v755
    %v1012 = vpack.c.b16 %v760, %v756
    %v1013 = vpack.c.b16 %v761, %v757
    %v1014 = vpack.c.b16 %v766, %v762
    %v1015 = vpack.c.b16 %v767, %v763
    %v1016 = vpack.c.b16 %v768, %v764
    %v1017 = vpack.c.b16 %v769, %v765
    %v1018 = vpack.c.b16 %v774, %v770
    %v1019 = vpack.c.b16 %v775, %v771
    %v1020 = vpack.c.b16 %v776, %v772
    %v1021 = vpack.c.b16 %v777, %v773
    %v1022 = vpack.c.b16 %v782, %v778
    %v1023 = vpack.c.b16 %v783, %v779
    %v1024 = vpack.c.b16 %v784, %v780
    %v1025 = vpack.c.b16 %v785, %v781
    %v1026 = vpack.c.b16 %v790, %v786
    %v1027 = vpack.c.b16 %v791, %v787
    %v1028 = vpack.c.b16 %v792, %v788
    %v1029 = vpack.c.b16 %v793, %v789
    %v1030 = vpack.c.b16 %v798, %v794
    %v1031 = vpack.c.b16 %v799, %v795
    %v1032 = vpack.c.b16 %v800, %v796
    %v1033 = vpack.c.b16 %v801, %v797
    %v1034 = vpack.c.b16 %v806, %v802
    %v1035 = vpack.c.b16 %v807, %v803
    %v1036 = vpack.c.b16 %v808, %v804
    %v1037 = vpack.c.b16 %v809, %v805
    %v1038 = vpack.c.b16 %v814, %v810
    %v1039 = vpack.c.b16 %v815, %v811
    %v1040 = vpack.c.b16 %v816, %v812
    %v1041 = vpack.c.b16 %v817, %v813
    %v1042 = vpack.c.b16 %v822, %v818
    %v1043 = vpack.c.b16 %v823, %v819
    %v1044 = vpack.c.b16 %v824, %v820
    %v1045 = vpack.c.b16 %v825, %v821
    %v1046 = vpack.c.b16 %v830, %v826
    %v1047 = vpack.c.b16 %v831, %v827
    %v1048 = vpack.c.b16 %v832, %v828
    %v1049 = vpack.c.b16 %v833, %v829
    %v1050 = vpack.c.b16 %v838, %v834
    %v1051 = vpack.c.b16 %v839, %v835
    %v1052 = vpack.c.b16 %v840, %v836
    %v1053 = vpack.c.b16 %v841, %v837
    %v1054 = vpack.c.b16 %v846, %v842
    %v1055 = vpack.c.b16 %v847, %v843
    %v1056 = vpack.c.b16 %v848, %v844
    %v1057 = vpack.c.b16 %v849, %v845
    %v1058 = vpack.c.b16 %v854, %v850
    %v1059 = vpack.c.b16 %v855, %v851
    %v1060 = vpack.c.b16 %v856, %v852
    %v1061 = vpack.c.b16 %v857, %v853
    %v1062 = vpack.c.b16 %v862, %v858
    %v1063 = vpack.c.b16 %v863, %v859
    %v1064 = vpack.c.b16 %v864, %v860
    %v1065 = vpack.c.b16 %v865, %v861
    %v1066 = vpack.c.b16 %v870, %v866
    %v1067 = vpack.c.b16 %v871, %v867
    %v1068 = vpack.c.b16 %v872, %v868
    %v1069 = vpack.c.b16 %v873, %v869
    %v1070 = vpack.c.b16 %v878, %v874
    %v1071 = vpack.c.b16 %v879, %v875
    %v1072 = vpack.c.b16 %v880, %v876
    %v1073 = vpack.c.b16 %v881, %v877
    %1266 = vmatprep.subr.bf16.mxu0 %v883
    %1267 = vmatpush1.bf16.msra.mxu0 %v882
    %1268 = vmatprep.subr.bf16.mxu0 %v887
    %1269 = vmatpush1.bf16.msra.mxu0 %v886
    %1270 = vmatprep.subr.bf16.mxu0 %v891
    %1271 = vmatpush1.bf16.msra.mxu0 %v890
    %1272 = vmatprep.subr.bf16.mxu0 %v895
    %1273 = vmatpush1.bf16.msra.mxu0 %v894
    %1274 = vmatprep.subr.bf16.mxu0 %v899
    %1275 = vmatpush1.bf16.msra.mxu0 %v898
    %1276 = vmatprep.subr.bf16.mxu0 %v903
    %1277 = vmatpush1.bf16.msra.mxu0 %v902
    %1278 = vmatprep.subr.bf16.mxu0 %v907
    %1279 = vmatpush1.bf16.msra.mxu0 %v906
    %1280 = vmatprep.subr.bf16.mxu0 %v911
    %1281 = vmatpush1.bf16.msra.mxu0 %v910
    %1282 = vmatprep.subr.bf16.mxu0 %v915
    %1283 = vmatpush1.bf16.msra.mxu0 %v914
    %1284 = vmatprep.subr.bf16.mxu0 %v919
    %1285 = vmatpush1.bf16.msra.mxu0 %v918
    %1286 = vmatprep.subr.bf16.mxu0 %v923
    %1287 = vmatpush1.bf16.msra.mxu0 %v922
    %1288 = vmatprep.subr.bf16.mxu0 %v927
    %1289 = vmatpush1.bf16.msra.mxu0 %v926
    %1290 = vmatprep.subr.bf16.mxu0 %v931
    %1291 = vmatpush1.bf16.msra.mxu0 %v930
    %1292 = vmatprep.subr.bf16.mxu0 %v935
    %1293 = vmatpush1.bf16.msra.mxu0 %v934
    %1294 = vmatprep.subr.bf16.mxu0 %v939
    %1295 = vmatpush1.bf16.msra.mxu0 %v938
    %1296 = vmatprep.subr.bf16.mxu0 %v943
    %1297 = vmatpush1.bf16.msra.mxu0 %v942
    %1298 = vmatprep.mubr.bf16.mxu0 %v295
    %1299 = vmatmul.mubr.bf16.gmra.mrb[0].mxu0 %v294
    %v1300 = vpop.f32.mrb[0].mxu0
    %v1301 = vadd.f32 %v259, %v1300
    %v1302 = vpop.f32.mrb[0].mxu0
    %v1303 = vadd.f32 %v263, %v1302
    %v1304 = vpop.f32.mrb[0].mxu0
    %v1305 = vadd.f32 %v259, %v1304
    %v1306 = vpop.f32.mrb[0].mxu0
    %v1307 = vadd.f32 %v263, %v1306
    %1308 = vdwg.mxu0
    %1309 = vmatprep.subr.bf16.mxu0 %v947
    %1310 = vmatpush1.bf16.msra.mxu0 %v946
    %1311 = vmatprep.subr.bf16.mxu0 %v951
    %1312 = vmatpush1.bf16.msra.mxu0 %v950
    %1313 = vmatprep.subr.bf16.mxu0 %v955
    %1314 = vmatpush1.bf16.msra.mxu0 %v954
    %1315 = vmatprep.subr.bf16.mxu0 %v959
    %1316 = vmatpush1.bf16.msra.mxu0 %v958
    %1317 = vmatprep.subr.bf16.mxu0 %v963
    %1318 = vmatpush1.bf16.msra.mxu0 %v962
    %1319 = vmatprep.subr.bf16.mxu0 %v967
    %1320 = vmatpush1.bf16.msra.mxu0 %v966
    %1321 = vmatprep.subr.bf16.mxu0 %v971
    %1322 = vmatpush1.bf16.msra.mxu0 %v970
    %1323 = vmatprep.subr.bf16.mxu0 %v975
    %1324 = vmatpush1.bf16.msra.mxu0 %v974
    %1325 = vmatprep.subr.bf16.mxu0 %v979
    %1326 = vmatpush1.bf16.msra.mxu0 %v978
    %1327 = vmatprep.subr.bf16.mxu0 %v983
    %1328 = vmatpush1.bf16.msra.mxu0 %v982
    %1329 = vmatprep.subr.bf16.mxu0 %v987
    %1330 = vmatpush1.bf16.msra.mxu0 %v986
    %1331 = vmatprep.subr.bf16.mxu0 %v991
    %1332 = vmatpush1.bf16.msra.mxu0 %v990
    %1333 = vmatprep.subr.bf16.mxu0 %v995
    %1334 = vmatpush1.bf16.msra.mxu0 %v994
    %1335 = vmatprep.subr.bf16.mxu0 %v999
    %1336 = vmatpush1.bf16.msra.mxu0 %v998
    %1337 = vmatprep.subr.bf16.mxu0 %v1003
    %1338 = vmatpush1.bf16.msra.mxu0 %v1002
    %1339 = vmatprep.subr.bf16.mxu0 %v1007
    %1340 = vmatpush1.bf16.msra.mxu0 %v1006
    %1341 = vmatprep.mubr.bf16.mxu0 %v297
    %1342 = vmatmul.mubr.bf16.gmra.mrb[0].mxu0 %v296
    %v1343 = vpop.f32.mrb[0].mxu0
    %v1344 = vadd.f32 %v1301, %v1343
    %v1345 = vpop.f32.mrb[0].mxu0
    %v1346 = vadd.f32 %v1303, %v1345
    %v1347 = vpop.f32.mrb[0].mxu0
    %v1348 = vadd.f32 %v1305, %v1347
    %v1349 = vpop.f32.mrb[0].mxu0
    %v1350 = vadd.f32 %v1307, %v1349
    %1351 = vdwg.mxu0
    %1352 = vmatprep.subr.bf16.mxu0 %v1011
    %1353 = vmatpush1.bf16.msra.mxu0 %v1010
    %1354 = vmatprep.subr.bf16.mxu0 %v1015
    %1355 = vmatpush1.bf16.msra.mxu0 %v1014
    %1356 = vmatprep.subr.bf16.mxu0 %v1019
    %1357 = vmatpush1.bf16.msra.mxu0 %v1018
    %1358 = vmatprep.subr.bf16.mxu0 %v1023
    %1359 = vmatpush1.bf16.msra.mxu0 %v1022
    %1360 = vmatprep.subr.bf16.mxu0 %v1027
    %1361 = vmatpush1.bf16.msra.mxu0 %v1026
    %1362 = vmatprep.subr.bf16.mxu0 %v1031
    %1363 = vmatpush1.bf16.msra.mxu0 %v1030
    %1364 = vmatprep.subr.bf16.mxu0 %v1035
    %1365 = vmatpush1.bf16.msra.mxu0 %v1034
    %1366 = vmatprep.subr.bf16.mxu0 %v1039
    %1367 = vmatpush1.bf16.msra.mxu0 %v1038
    %1368 = vmatprep.subr.bf16.mxu0 %v1043
    %1369 = vmatpush1.bf16.msra.mxu0 %v1042
    %1370 = vmatprep.subr.bf16.mxu0 %v1047
    %1371 = vmatpush1.bf16.msra.mxu0 %v1046
    %1372 = vmatprep.subr.bf16.mxu0 %v1051
    %1373 = vmatpush1.bf16.msra.mxu0 %v1050
    %1374 = vmatprep.subr.bf16.mxu0 %v1055
    %1375 = vmatpush1.bf16.msra.mxu0 %v1054
    %1376 = vmatprep.subr.bf16.mxu0 %v1059
    %1377 = vmatpush1.bf16.msra.mxu0 %v1058
    %1378 = vmatprep.subr.bf16.mxu0 %v1063
    %1379 = vmatpush1.bf16.msra.mxu0 %v1062
    %1380 = vmatprep.subr.bf16.mxu0 %v1067
    %1381 = vmatpush1.bf16.msra.mxu0 %v1066
    %1382 = vmatprep.subr.bf16.mxu0 %v1071
    %1383 = vmatpush1.bf16.msra.mxu0 %v1070
    %1384 = vmatprep.mubr.bf16.mxu0 %v299
    %1385 = vmatmul.mubr.bf16.gmra.mrb[0].mxu0 %v298
    %v1386 = vpop.f32.mrb[0].mxu0
    %v1387 = vadd.f32 %v1344, %v1386
    %v1388 = vpop.f32.mrb[0].mxu0
    %v1389 = vadd.f32 %v1346, %v1388
    %v1390 = vpop.f32.mrb[0].mxu0
    %v1391 = vadd.f32 %v1348, %v1390
    %v1392 = vpop.f32.mrb[0].mxu0
    %v1393 = vadd.f32 %v1350, %v1392
    %1394 = vdwg.mxu0
    %1395 = vmatprep.subr.bf16.mxu0 %v885
    %1396 = vmatpush1.bf16.msra.mxu0 %v884
    %1397 = vmatprep.subr.bf16.mxu0 %v889
    %1398 = vmatpush1.bf16.msra.mxu0 %v888
    %1399 = vmatprep.subr.bf16.mxu0 %v893
    %1400 = vmatpush1.bf16.msra.mxu0 %v892
    %1401 = vmatprep.subr.bf16.mxu0 %v897
    %1402 = vmatpush1.bf16.msra.mxu0 %v896
    %1403 = vmatprep.subr.bf16.mxu0 %v901
    %1404 = vmatpush1.bf16.msra.mxu0 %v900
    %1405 = vmatprep.subr.bf16.mxu0 %v905
    %1406 = vmatpush1.bf16.msra.mxu0 %v904
    %1407 = vmatprep.subr.bf16.mxu0 %v909
    %1408 = vmatpush1.bf16.msra.mxu0 %v908
    %1409 = vmatprep.subr.bf16.mxu0 %v913
    %1410 = vmatpush1.bf16.msra.mxu0 %v912
    %1411 = vmatprep.subr.bf16.mxu0 %v917
    %1412 = vmatpush1.bf16.msra.mxu0 %v916
    %1413 = vmatprep.subr.bf16.mxu0 %v921
    %1414 = vmatpush1.bf16.msra.mxu0 %v920
    %1415 = vmatprep.subr.bf16.mxu0 %v925
    %1416 = vmatpush1.bf16.msra.mxu0 %v924
    %1417 = vmatprep.subr.bf16.mxu0 %v929
    %1418 = vmatpush1.bf16.msra.mxu0 %v928
    %1419 = vmatprep.subr.bf16.mxu0 %v933
    %1420 = vmatpush1.bf16.msra.mxu0 %v932
    %1421 = vmatprep.subr.bf16.mxu0 %v937
    %1422 = vmatpush1.bf16.msra.mxu0 %v936
    %1423 = vmatprep.subr.bf16.mxu0 %v941
    %1424 = vmatpush1.bf16.msra.mxu0 %v940
    %1425 = vmatprep.subr.bf16.mxu0 %v945
    %1426 = vmatpush1.bf16.msra.mxu0 %v944
    %1427 = vmatprep.mubr.bf16.mxu0 %v295
    %1428 = vmatmul.mubr.bf16.gmra.mrb[0].mxu0 %v294
    %v1429 = vpop.f32.mrb[0].mxu0
    %v1430 = vadd.f32 %v267, %v1429
    %v1431 = vpop.f32.mrb[0].mxu0
    %v1432 = vadd.f32 %v271, %v1431
    %v1433 = vpop.f32.mrb[0].mxu0
    %v1434 = vadd.f32 %v267, %v1433
    %v1435 = vpop.f32.mrb[0].mxu0
    %v1436 = vadd.f32 %v271, %v1435
    %1437 = vdwg.mxu0
    %1438 = vmatprep.subr.bf16.mxu0 %v949
    %1439 = vmatpush1.bf16.msra.mxu0 %v948
    %1440 = vmatprep.subr.bf16.mxu0 %v953
    %1441 = vmatpush1.bf16.msra.mxu0 %v952
    %1442 = vmatprep.subr.bf16.mxu0 %v957
    %1443 = vmatpush1.bf16.msra.mxu0 %v956
    %1444 = vmatprep.subr.bf16.mxu0 %v961
    %1445 = vmatpush1.bf16.msra.mxu0 %v960
    %1446 = vmatprep.subr.bf16.mxu0 %v965
    %1447 = vmatpush1.bf16.msra.mxu0 %v964
    %1448 = vmatprep.subr.bf16.mxu0 %v969
    %1449 = vmatpush1.bf16.msra.mxu0 %v968
    %1450 = vmatprep.subr.bf16.mxu0 %v973
    %1451 = vmatpush1.bf16.msra.mxu0 %v972
    %1452 = vmatprep.subr.bf16.mxu0 %v977
    %1453 = vmatpush1.bf16.msra.mxu0 %v976
    %1454 = vmatprep.subr.bf16.mxu0 %v981
    %1455 = vmatpush1.bf16.msra.mxu0 %v980
    %1456 = vmatprep.subr.bf16.mxu0 %v985
    %1457 = vmatpush1.bf16.msra.mxu0 %v984
    %1458 = vmatprep.subr.bf16.mxu0 %v989
    %1459 = vmatpush1.bf16.msra.mxu0 %v988
    %1460 = vmatprep.subr.bf16.mxu0 %v993
    %1461 = vmatpush1.bf16.msra.mxu0 %v992
    %1462 = vmatprep.subr.bf16.mxu0 %v997
    %1463 = vmatpush1.bf16.msra.mxu0 %v996
    %1464 = vmatprep.subr.bf16.mxu0 %v1001
    %1465 = vmatpush1.bf16.msra.mxu0 %v1000
    %1466 = vmatprep.subr.bf16.mxu0 %v1005
    %1467 = vmatpush1.bf16.msra.mxu0 %v1004
    %1468 = vmatprep.subr.bf16.mxu0 %v1009
    %1469 = vmatpush1.bf16.msra.mxu0 %v1008
    %1470 = vmatprep.mubr.bf16.mxu0 %v297
    %1471 = vmatmul.mubr.bf16.gmra.mrb[0].mxu0 %v296
    %v1472 = vpop.f32.mrb[0].mxu0
    %v1473 = vadd.f32 %v1430, %v1472
    %v1474 = vpop.f32.mrb[0].mxu0
    %v1475 = vadd.f32 %v1432, %v1474
    %v1476 = vpop.f32.mrb[0].mxu0
    %v1477 = vadd.f32 %v1434, %v1476
    %v1478 = vpop.f32.mrb[0].mxu0
    %v1479 = vadd.f32 %v1436, %v1478
    %1480 = vdwg.mxu0
    %1481 = vmatprep.subr.bf16.mxu0 %v1013
    %1482 = vmatpush1.bf16.msra.mxu0 %v1012
    %1483 = vmatprep.subr.bf16.mxu0 %v1017
    %1484 = vmatpush1.bf16.msra.mxu0 %v1016
    %1485 = vmatprep.subr.bf16.mxu0 %v1021
    %1486 = vmatpush1.bf16.msra.mxu0 %v1020
    %1487 = vmatprep.subr.bf16.mxu0 %v1025
    %1488 = vmatpush1.bf16.msra.mxu0 %v1024
    %1489 = vmatprep.subr.bf16.mxu0 %v1029
    %1490 = vmatpush1.bf16.msra.mxu0 %v1028
    %1491 = vmatprep.subr.bf16.mxu0 %v1033
    %1492 = vmatpush1.bf16.msra.mxu0 %v1032
    %1493 = vmatprep.subr.bf16.mxu0 %v1037
    %1494 = vmatpush1.bf16.msra.mxu0 %v1036
    %1495 = vmatprep.subr.bf16.mxu0 %v1041
    %1496 = vmatpush1.bf16.msra.mxu0 %v1040
    %1497 = vmatprep.subr.bf16.mxu0 %v1045
    %1498 = vmatpush1.bf16.msra.mxu0 %v1044
    %1499 = vmatprep.subr.bf16.mxu0 %v1049
    %1500 = vmatpush1.bf16.msra.mxu0 %v1048
    %1501 = vmatprep.subr.bf16.mxu0 %v1053
    %1502 = vmatpush1.bf16.msra.mxu0 %v1052
    %1503 = vmatprep.subr.bf16.mxu0 %v1057
    %1504 = vmatpush1.bf16.msra.mxu0 %v1056
    %1505 = vmatprep.subr.bf16.mxu0 %v1061
    %1506 = vmatpush1.bf16.msra.mxu0 %v1060
    %1507 = vmatprep.subr.bf16.mxu0 %v1065
    %1508 = vmatpush1.bf16.msra.mxu0 %v1064
    %1509 = vmatprep.subr.bf16.mxu0 %v1069
    %1510 = vmatpush1.bf16.msra.mxu0 %v1068
    %1511 = vmatprep.subr.bf16.mxu0 %v1073
    %1512 = vmatpush1.bf16.msra.mxu0 %v1072
    %1513 = vmatprep.mubr.bf16.mxu0 %v299
    %1514 = vmatmul.mubr.bf16.gmra.mrb[0].mxu0 %v298
    %v1515 = vpop.f32.mrb[0].mxu0
    %v1516 = vadd.f32 %v1473, %v1515
    %v1517 = vpop.f32.mrb[0].mxu0
    %v1518 = vadd.f32 %v1475, %v1517
    %v1519 = vpop.f32.mrb[0].mxu0
    %v1520 = vadd.f32 %v1477, %v1519
    %v1521 = vpop.f32.mrb[0].mxu0
    %v1522 = vadd.f32 %v1479, %v1521
    %1523 = vdwg.mxu0
    %v1524 = vtanh.pop %v1387
    %v1525 = vtanh.pop %v1389
    %v1526 = vtanh.pop %v1516
    %v1527 = vtanh.pop %v1518
    %v1528 = vtanh.pop %v1391
    %v1529 = vtanh.pop %v1393
    %v1530 = vtanh.pop %v1520
    %v1531 = vtanh.pop %v1522
    %v1532 = vld [vmem:[%s3] sm:$0xf]
    %v1534 = vlaneseq
    %v1535 = vshrl.u32 %v1534, 7
    %v1536 = vsub.s32 0, %v1535
    %v1537 = vrot.slane %v1532, %v1536
    %v1538 = vlaneseq
    %v1539 = vshrl.u32 %v1538, 7
    %v1540 = vsub.s32 1, %v1539
    %v1541 = vrot.slane %v1532, %v1540
    %v1542 = vlaneseq
    %v1543 = vshrl.u32 %v1542, 7
    %v1544 = vsub.s32 2, %v1543
    %v1545 = vrot.slane %v1532, %v1544
    %v1546 = vlaneseq
    %v1547 = vshrl.u32 %v1546, 7
    %v1548 = vsub.s32 3, %v1547
    %v1549 = vrot.slane %v1532, %v1548
    %v1554 = vmul.f32 %v1524, %v1537
    %v1555 = vmul.f32 %v1525, %v1541
    %v1556 = vmul.f32 %v1526, %v1545
    %v1557 = vmul.f32 %v1527, %v1549
    %v1558 = vmul.f32 %v1528, %v1537
    %v1559 = vmul.f32 %v1529, %v1541
    %v1560 = vmul.f32 %v1530, %v1545
    %v1561 = vmul.f32 %v1531, %v1549
    %v1562 = vadd.f32 %v1554, %v1555
    %v1563 = vadd.f32 %v1562, %v1556
    %v1564 = vadd.f32 %v1563, %v1557
    %1565 = vadd.xlane.f32.xlu0 %v1564
    %v1566 = vpop.xlane.xlu0 %1565
    %v1567 = vadd.f32 %v1558, %v1559
    %v1568 = vadd.f32 %v1567, %v1560
    %v1569 = vadd.f32 %v1568, %v1561
    %1570 = vadd.xlane.f32.xlu0 %v1569
    %v1571 = vpop.xlane.xlu0 %1570
    %s1572 = sld [smem:[#allocation2]]
    %v1573 = vstv %s1572
    %v1574 = vadd.f32 %v1566, %v1573
    %v1575 = vadd.f32 %v1571, %v1573
    %v1576 = vunpack.c.l.bf16 %v56
    %v1577 = vunpack.c.h.bf16 %v56
    %v1578 = vunpack.c.l.bf16 %v57
    %v1579 = vunpack.c.h.bf16 %v57
    %v1580 = vunpack.c.l.bf16 %v58
    %v1581 = vunpack.c.h.bf16 %v58
    %v1582 = vunpack.c.l.bf16 %v59
    %v1583 = vunpack.c.h.bf16 %v59
    %v1584 = vunpack.c.l.bf16 %v60
    %v1585 = vunpack.c.h.bf16 %v60
    %v1586 = vunpack.c.l.bf16 %v61
    %v1587 = vunpack.c.h.bf16 %v61
    %v1588 = vld [vmem:[%s5] sm:$0x3f]
    %v1590 = vlaneseq
    %v1591 = vshrl.u32 %v1590, 7
    %v1592 = vsub.s32 0, %v1591
    %v1593 = vrot.slane %v1588, %v1592
    %v1594 = vlaneseq
    %v1595 = vshrl.u32 %v1594, 7
    %v1596 = vsub.s32 1, %v1595
    %v1597 = vrot.slane %v1588, %v1596
    %v1598 = vlaneseq
    %v1599 = vshrl.u32 %v1598, 7
    %v1600 = vsub.s32 2, %v1599
    %v1601 = vrot.slane %v1588, %v1600
    %v1602 = vlaneseq
    %v1603 = vshrl.u32 %v1602, 7
    %v1604 = vsub.s32 3, %v1603
    %v1605 = vrot.slane %v1588, %v1604
    %v1606 = vlaneseq
    %v1607 = vshrl.u32 %v1606, 7
    %v1608 = vsub.s32 4, %v1607
    %v1609 = vrot.slane %v1588, %v1608
    %v1610 = vlaneseq
    %v1611 = vshrl.u32 %v1610, 7
    %v1612 = vsub.s32 5, %v1611
    %v1613 = vrot.slane %v1588, %v1612
    %v1620 = vmul.f32 %v1576, %v1593
    %v1621 = vmul.f32 %v1577, %v1597
    %v1622 = vmul.f32 %v1578, %v1601
    %v1623 = vmul.f32 %v1579, %v1605
    %v1624 = vmul.f32 %v1580, %v1609
    %v1625 = vmul.f32 %v1581, %v1613
    %v1626 = vmul.f32 %v1582, %v1593
    %v1627 = vmul.f32 %v1583, %v1597
    %v1628 = vmul.f32 %v1584, %v1601
    %v1629 = vmul.f32 %v1585, %v1605
    %v1630 = vmul.f32 %v1586, %v1609
    %v1631 = vmul.f32 %v1587, %v1613
    %v1632 = vadd.f32 %v1620, %v1621
    %v1633 = vadd.f32 %v1632, %v1622
    %v1634 = vadd.f32 %v1633, %v1623
    %v1635 = vadd.f32 %v1634, %v1624
    %v1636 = vadd.f32 %v1635, %v1625
    %1637 = vadd.xlane.f32.xlu0 %v1636
    %v1638 = vpop.xlane.xlu0 %1637
    %v1639 = vadd.f32 %v1626, %v1627
    %v1640 = vadd.f32 %v1639, %v1628
    %v1641 = vadd.f32 %v1640, %v1629
    %v1642 = vadd.f32 %v1641, %v1630
    %v1643 = vadd.f32 %v1642, %v1631
    %1644 = vadd.xlane.f32.xlu0 %v1643
    %v1645 = vpop.xlane.xlu0 %1644
    %v1648 = vlaneseq
    %v1649 = vand.u32 %v1648, 127
    %v1650 = vlaneseq
    %v1651 = vshrl.u32 %v1650, 7
    %v1652 = vsub.s32 %v1649, %v1651
    %v1653 = vrot.slane %v1574, %v1652
    %v1654 = vlaneseq
    %v1655 = vshrl.u32 %v1654, 7
    %v1656 = vsub.s32 %v1649, %v1655
    %v1657 = vrot.slane %v1575, %v1656
    %vm1658 = vcmask 1041409
    %v1659 = vsel %vm1658, %v1657, %v1653
    %vm1661 = vcmask 58368
    %v1662 = vsel %vm1661, %v1659, -inf
    %1663 = vmax.xlane.f32.xlu0 %v1662
    %v1664 = vpop.xlane.xlu0 %1663
    %v1666 = vlaneseq
    %v1667 = vshrl.u32 %v1666, 7
    %v1668 = vsub.s32 0, %v1667
    %v1669 = vrot.slane %v1664, %v1668
    %v1670 = vlaneseq
    %v1671 = vshrl.u32 %v1670, 7
    %v1672 = vsub.s32 1, %v1671
    %v1673 = vrot.slane %v1664, %v1672
    %v1676 = vsub.f32 %v1574, %v1669
    %v1677 = vsub.f32 %v1575, %v1673
    %v1678 = vmul.f32 %v1676, 1.442695
    %v1679 = vpow.pop %v1678
    %v1680 = vmul.f32 %v1677, 1.442695
    %v1681 = vpow.pop %v1680
    %1684 = vset.pattern.permute.xlu0 0
    %1685 = vperm.xlu0 %1684, %v1679
    %v1686 = vpop.permute.xlu0 %1685
    %1687 = vset.pattern.permute.xlu0 0
    %1688 = vperm.xlu0 %1687, %v1681
    %v1689 = vpop.permute.xlu0 %1688
    %v1690 = vlaneseq
    %v1691 = vshrl.u32 %v1690, 7
    %v1692 = vsub.s32 %v1649, %v1691
    %v1693 = vrot.slane %v1686, %v1692
    %v1694 = vlaneseq
    %v1695 = vshrl.u32 %v1694, 7
    %v1696 = vsub.s32 %v1649, %v1695
    %v1697 = vrot.slane %v1689, %v1696
    %v1698 = vsel %vm1658, %v1697, %v1693
    %v1700 = vsel %vm1661, %v1698, 0.0
    %1701 = vadd.xlane.f32.xlu0 %v1700
    %v1702 = vpop.xlane.xlu0 %1701
    %v1703 = vrcp.pop %v1702
    %v1705 = vlaneseq
    %v1706 = vshrl.u32 %v1705, 7
    %v1707 = vsub.s32 0, %v1706
    %v1708 = vrot.slane %v1703, %v1707
    %v1709 = vlaneseq
    %v1710 = vshrl.u32 %v1709, 7
    %v1711 = vsub.s32 1, %v1710
    %v1712 = vrot.slane %v1703, %v1711
    %v1715 = vmul.f32 %v1679, %v1708
    %v1716 = vmul.f32 %v1681, %v1712
    %v1717 = vmul.f32 %v1715, %v1638
    %v1718 = vmul.f32 %v1716, %v1645
    %1721 = vset.pattern.permute.xlu0 0
    %1722 = vperm.xlu0 %1721, %v1717
    %v1723 = vpop.permute.xlu0 %1722
    %1724 = vset.pattern.permute.xlu0 0
    %1725 = vperm.xlu0 %1724, %v1718
    %v1726 = vpop.permute.xlu0 %1725
    %v1727 = vlaneseq
    %v1728 = vshrl.u32 %v1727, 7
    %v1729 = vsub.s32 %v1649, %v1728
    %v1730 = vrot.slane %v1723, %v1729
    %v1731 = vlaneseq
    %v1732 = vshrl.u32 %v1731, 7
    %v1733 = vsub.s32 %v1649, %v1732
    %v1734 = vrot.slane %v1726, %v1733
    %v1735 = vsel %vm1658, %v1734, %v1730
    %v1737 = vsel %vm1661, %v1735, 0.0
    %1738 = vadd.xlane.f32.xlu0 %v1737
    %v1739 = vpop.xlane.xlu0 %1738
    %s1740 = sld [smem:[#allocation3]]
    %v1741 = vstv %s1740
    %v1742 = vadd.f32 %v1739, %v1741
    %vm1743 = vcmask 1024
    %1744 = vst.msk [vmem:[%s7] sm:$0x3] %vm1743, %v1742
    // Predicated region
    $region38: #{tpu_custom_call.1} parent=1 // pred_check
      _
    $region39: #{tpu_custom_call.1} parent=1 // pred_check_branch
      %1746 = sbr.rel (0) target = $region41
    $region40: #{tpu_custom_call.1} parent=1 // pred_region
      _
    $region41: #{tpu_custom_call.1} parent=1 // pred_fallthru
      _
    // Predicated region
    $region42: #{tpu_custom_call.1} parent=1 // pred_check
      _
    $region43: #{tpu_custom_call.1} parent=1 // pred_check_branch
      %1748 = sbr.rel (0) target = $region45
    $region44: #{tpu_custom_call.1} parent=1 // pred_region
      _
    $region45: #{tpu_custom_call.1} parent=1 // pred_fallthru
      _
    %1749 = vsyncpa [#allocation5], 1
    %1750 = vsyncpa [#allocation7], 1

</llo_original>
